<compile_context>
chip_gen: v7x
topology: tpu7x:2x2x1
jax: 0.10.0
libtpu: 0.0.40
codegen_flags: <defaults>
</compile_context>

<pallas_src>
import math

import jax
import jax.numpy as jnp
from jax import lax
from jax.experimental import pallas as pl
from jax.experimental.pallas import tpu as pltpu

# ---------------- model hyper-parameters (small, deterministic) -------------
VOCAB = 100
MAX_POS = 16
TYPE_VOCAB = 2
HIDDEN = 32          # hidden_size
NUM_HEADS = 2
HEAD_DIM = HIDDEN // NUM_HEADS
FFN = 64
NUM_LAYERS = 2
NUM_CLASSES = 4
BATCH = 2
SEQ = 8
LN_EPS = 1e-12
LANE = 128           # padded classifier / packed-vector width -> lane-dense tiles


# ------------------------------ in-kernel helpers ----------------------------
def _layernorm(x, gamma, beta):
    mu = jnp.mean(x, axis=-1, keepdims=True)
    xc = x - mu
    var = jnp.mean(xc * xc, axis=-1, keepdims=True)
    return xc * lax.rsqrt(var + LN_EPS) * gamma + beta


def _gelu(x):
    # tanh approximation of GELU (EUP-friendly); HF exact-erf GELU differs slightly.
    c = math.sqrt(2.0 / math.pi)
    return 0.5 * x * (1.0 + jnp.tanh(c * (x + 0.044715 * x * x * x)))


# ------------------------------ fused forward kernel -------------------------
def fused_forward_kernel(x_ref, kbias_ref, wattn_ref, wffn_ref, vecs_ref,
                         clsw_ref, glob_ref, out_ref):
    # One grid step == one example.
    #   x_ref     : (1, S, H)  f32 token+pos+type embeddings (pre-LN)
    #   kbias_ref : (1, 1, S)  f32 additive key-padding bias (0 / -1e9)
    #   wattn_ref : (L, H, 4H) bf16  [wq | wk | wv | wo]
    #   wffn_ref  : (L, H+F, F) bf16 rows 0:H = w1, rows H: (cols 0:H) = w2
    #   vecs_ref  : (L, 3, 128) f32 packed biases / LN params
    #   clsw_ref  : (H, 128)   bf16 classifier weight (zero-padded columns)
    #   glob_ref  : (2, 128)   f32 row0=[emb_ln_g|emb_ln_b|0], row1=cls_bias(padded)
    #   out_ref   : (1, 1, 128) f32 padded CLS logits
    H, HD, F = HIDDEN, HEAD_DIM, FFN
    glob = glob_ref[...]                                            # (2, 128)
    x = _layernorm(x_ref[0], glob[0:1, 0:H], glob[0:1, H:2 * H])    # (S, H) f32
    kbias = kbias_ref[0]                                            # (1, S)
    scale = 1.0 / math.sqrt(HD)

    for l in range(NUM_LAYERS):            # static unroll; weights stay VMEM-resident
        wl = wattn_ref[l]                  # (H, 4H) bf16
        fl = wffn_ref[l]                   # (H+F, F) bf16
        vl = vecs_ref[l]                   # (3, 128) f32

        # ---- fused QKV: ONE (S,H)@(H,3H) MXU pass, 96 output lanes ----
        qkv = jnp.dot(x.astype(jnp.bfloat16), wl[:, :3 * H],
                      preferred_element_type=jnp.float32) + vl[0:1, :3 * H]   # (S, 3H)

        # ---- attention: static head unroll for scores/context; single fused Wo ----
        ctx_parts = []
        for h in range(NUM_HEADS):
            qs = (qkv[:, h * HD:(h + 1) * HD] * scale).astype(jnp.bfloat16)
            ks = qkv[:, H + h * HD:H + (h + 1) * HD].astype(jnp.bfloat16)
            vs = qkv[:, 2 * H + h * HD:2 * H + (h + 1) * HD].astype(jnp.bfloat16)
            # q @ k^T without materializing a transpose (contract last-vs-last)
            s = lax.dot_general(qs, ks, (((1,), (1,)), ((), ())),
                                preferred_element_type=jnp.float32)           # (S, S)
            s = s + kbias                                                     # key padding
            s = s - jnp.max(s, axis=-1, keepdims=True)
            p = jnp.exp(s)
            p = p * pl.reciprocal(jnp.sum(p, axis=-1, keepdims=True), approx=True)
            ctx_parts.append(jnp.dot(p.astype(jnp.bfloat16), vs,
                                     preferred_element_type=jnp.float32))     # (S, HD)
        ctx = jnp.concatenate(ctx_parts, axis=-1)                             # (S, H)
        attn = jnp.dot(ctx.astype(jnp.bfloat16), wl[:, 3 * H:],
                       preferred_element_type=jnp.float32) + vl[0:1, 3 * H:]

        # ---- Add & LN, GELU-FFN, Add & LN (all elementwise math in f32) ----
        h1 = _layernorm(x + attn, vl[1:2, 0:H], vl[1:2, H:2 * H])
        ff = _gelu(jnp.dot(h1.astype(jnp.bfloat16), fl[:H, :],
                           preferred_element_type=jnp.float32) + vl[2:3, 0:F])
        ff = jnp.dot(ff.astype(jnp.bfloat16), fl[H:, :H],
                     preferred_element_type=jnp.float32) + vl[2:3, F:F + H]
        x = _layernorm(h1 + ff, vl[1:2, 2 * H:3 * H], vl[1:2, 3 * H:4 * H])

    # ---- classifier on the CLS row only; 128-lane padded weight -> lane-dense store ----
    cls = x[0:1, :]                                                           # (1, H)
    out_ref[0] = (jnp.dot(cls.astype(jnp.bfloat16), clsw_ref[...],
                          preferred_element_type=jnp.float32) + glob[1:2, :])


# ------------------------------ wrapper --------------------------------------
def fused_forward_pallas(x_emb, kbias, params):
    B = x_emb.shape[0]
    return pl.pallas_call(
        fused_forward_kernel,
        out_shape=jax.ShapeDtypeStruct((B, 1, LANE), jnp.float32),
        grid=(B,),
        in_specs=[
            pl.BlockSpec((1, SEQ, HIDDEN), lambda b: (b, 0, 0)),          # per-example tokens
            pl.BlockSpec((1, 1, SEQ), lambda b: (b, 0, 0)),               # per-example key bias
            pl.BlockSpec((NUM_LAYERS, HIDDEN, 4 * HIDDEN), lambda b: (0, 0, 0)),
            pl.BlockSpec((NUM_LAYERS, HIDDEN + FFN, FFN), lambda b: (0, 0, 0)),
            pl.BlockSpec((NUM_LAYERS, 3, LANE), lambda b: (0, 0, 0)),
            pl.BlockSpec((HIDDEN, LANE), lambda b: (0, 0)),
            pl.BlockSpec((2, LANE), lambda b: (0, 0)),
        ],
        out_specs=pl.BlockSpec((1, 1, LANE), lambda b: (b, 0, 0)),
        compiler_params=pltpu.CompilerParams(dimension_semantics=("parallel",)),
    )(x_emb, kbias, params["w_attn"], params["w_ffn"], params["vecs"],
      params["cls_w_pad"], params["glob"])


# ------------------------------ parameters ------------------------------------
def init_params(key):
    def dense(k, shape, scale=0.02):
        return scale * jax.random.normal(k, shape, dtype=jnp.float32)

    keys = jax.random.split(key, 4 + NUM_LAYERS)
    params = {
        "word_emb": dense(keys[0], (VOCAB, HIDDEN)),
        "pos_emb": dense(keys[1], (MAX_POS, HIDDEN)),
        "type_emb": dense(keys[2], (TYPE_VOCAB, HIDDEN)),
    }

    # classifier (padded to 128 lanes, bf16) + f32 "globals" slab (emb LN + cls bias)
    cls_w = dense(keys[3], (HIDDEN, NUM_CLASSES))
    cls_b = jnp.zeros((NUM_CLASSES,), jnp.float32)
    emb_ln_g = jnp.ones((HIDDEN,), jnp.float32)
    emb_ln_b = jnp.zeros((HIDDEN,), jnp.float32)
    params["cls_w_pad"] = (
        jnp.zeros((HIDDEN, LANE), jnp.float32).at[:, :NUM_CLASSES].set(cls_w)
    ).astype(jnp.bfloat16)
    glob = jnp.zeros((2, LANE), jnp.float32)
    glob = glob.at[0, 0:HIDDEN].set(emb_ln_g)
    glob = glob.at[0, HIDDEN:2 * HIDDEN].set(emb_ln_b)
    glob = glob.at[1, 0:NUM_CLASSES].set(cls_b)
    params["glob"] = glob

    w_attn, w_ffn, vecs = [], [], []
    for l in range(NUM_LAYERS):
        lk = jax.random.split(keys[4 + l], 6)
        wq, wk, wv, wo = (dense(lk[i], (HIDDEN, HIDDEN)) for i in range(4))
        w1 = dense(lk[4], (HIDDEN, FFN))
        w2 = dense(lk[5], (FFN, HIDDEN))
        bq = bk = bv = bo = jnp.zeros((HIDDEN,), jnp.float32)
        b1 = jnp.zeros((FFN,), jnp.float32)
        b2 = jnp.zeros((HIDDEN,), jnp.float32)
        ln1_g = ln2_g = jnp.ones((HIDDEN,), jnp.float32)
        ln1_b = ln2_b = jnp.zeros((HIDDEN,), jnp.float32)

        # packed attention weights: (H, 4H) = [wq | wk | wv | wo]  (exactly 128 lanes)
        w_attn.append(jnp.concatenate([wq, wk, wv, wo], axis=1))

        # packed FFN weights: rows 0:H = w1 (H,F); rows H:H+F (cols 0:H) = w2 (F,H)
        ffn_blk = jnp.zeros((HIDDEN + FFN, FFN), jnp.float32)
        ffn_blk = ffn_blk.at[:HIDDEN, :].set(w1)
        ffn_blk = ffn_blk.at[HIDDEN:, :HIDDEN].set(w2)
        w_ffn.append(ffn_blk)

        # packed per-layer vectors: (3, 128)
        v = jnp.zeros((3, LANE), jnp.float32)
        v = v.at[0, 0:3 * HIDDEN].set(jnp.concatenate([bq, bk, bv]))   # qkv bias
        v = v.at[0, 3 * HIDDEN:4 * HIDDEN].set(bo)                     # wo bias
        v = v.at[1, 0:HIDDEN].set(ln1_g)
        v = v.at[1, HIDDEN:2 * HIDDEN].set(ln1_b)
        v = v.at[1, 2 * HIDDEN:3 * HIDDEN].set(ln2_g)
        v = v.at[1, 3 * HIDDEN:4 * HIDDEN].set(ln2_b)
        v = v.at[2, 0:FFN].set(b1)
        v = v.at[2, FFN:FFN + HIDDEN].set(b2)
        vecs.append(v)

    params["w_attn"] = jnp.stack(w_attn).astype(jnp.bfloat16)   # (L, 32, 128)
    params["w_ffn"] = jnp.stack(w_ffn).astype(jnp.bfloat16)     # (L, 96, 64)
    params["vecs"] = jnp.stack(vecs)                            # (L, 3, 128) f32
    return params


# ------------------------------ forward ----------------------------------------
@jax.jit
def transformer_model_forward(params, input_ids, attention_mask):
    B, S = input_ids.shape
    # embeddings (gather = glue, plain JAX), token_type_ids = 0
    tok = params["word_emb"][input_ids]                       # (B, S, H)
    pos = params["pos_emb"][:S][None, :, :]                   # (1, S, H)
    typ = params["type_emb"][0][None, None, :]                # (1, 1, H)
    x = (tok + pos + typ).astype(jnp.float32)                 # (B, S, H)

    # HF semantics: key-side padding mask only. Tiny per-example additive bias (B, 1, S);
    # the kernel broadcasts it over query rows — no dense (B*S, B*S) mask is ever built.
    kbias = jnp.where(attention_mask.astype(bool), 0.0, -1e9).astype(jnp.float32)[:, None, :]

    logits_pad = fused_forward_pallas(x, kbias, params)       # (B, 1, 128)
    return logits_pad[:, 0, :NUM_CLASSES]                     # (B, num_classes)


if __name__ == "__main__":
    key = jax.random.PRNGKey(0)
    pkey, ikey = jax.random.split(key)
    params = init_params(pkey)

    input_ids = jax.random.randint(ikey, (BATCH, SEQ), 0, VOCAB, dtype=jnp.int32)
    attention_mask = jnp.ones((BATCH, SEQ), dtype=jnp.int32)
    # make the second example padded to exercise the masking path
    attention_mask = attention_mask.at[1, 6:].set(0)

    logits = transformer_model_forward(params, input_ids, attention_mask)
    logits = jax.block_until_ready(logits)
    assert logits.shape == (BATCH, NUM_CLASSES)
    assert bool(jnp.all(jnp.isfinite(logits)))
    print("KERNEL_OK")
</pallas_src>

<mosaic_0001>
module attributes {stable_mosaic.version = 11 : i64} {
  func.func @fused_forward_kernel(%arg0: i32, %arg1: memref<1x8x32xf32, #tpu.memory_space<vmem>>, %arg2: memref<1x1x8xf32, #tpu.memory_space<vmem>>, %arg3: memref<2x32x128xbf16, #tpu.memory_space<vmem>>, %arg4: memref<2x96x64xbf16, #tpu.memory_space<vmem>>, %arg5: memref<2x3x128xf32, #tpu.memory_space<vmem>>, %arg6: memref<32x128xbf16, #tpu.memory_space<vmem>>, %arg7: memref<2x128xf32, #tpu.memory_space<vmem>>, %arg8: memref<1x1x128xf32, #tpu.memory_space<vmem>>) attributes {dimension_semantics = [#tpu.dimension_semantics<parallel>], iteration_bounds = array<i64: 2>, scalar_prefetch = 0 : i64, scratch_operands = 0 : i64, tpu.core_type = #tpu.core_type<tc>, window_params = [{transform_indices = @transform_0, window_bounds = array<i64: 1, 8, 32>}, {transform_indices = @transform_1, window_bounds = array<i64: 1, 1, 8>}, {pipeline_mode = #tpu.pipeline_mode<synchronous>, transform_indices = @transform_2, window_bounds = array<i64: 2, 32, 128>}, {pipeline_mode = #tpu.pipeline_mode<synchronous>, transform_indices = @transform_3, window_bounds = array<i64: 2, 96, 64>}, {pipeline_mode = #tpu.pipeline_mode<synchronous>, transform_indices = @transform_4, window_bounds = array<i64: 2, 3, 128>}, {pipeline_mode = #tpu.pipeline_mode<synchronous>, transform_indices = @transform_5, window_bounds = array<i64: 32, 128>}, {pipeline_mode = #tpu.pipeline_mode<synchronous>, transform_indices = @transform_6, window_bounds = array<i64: 2, 128>}, {transform_indices = @transform_7, window_bounds = array<i64: 1, 1, 128>}]} {
    %c0 = arith.constant 0 : index
    %c0_0 = arith.constant 0 : index
    %0 = vector.load %arg7[%c0, %c0_0] : memref<2x128xf32, #tpu.memory_space<vmem>>, vector<2x128xf32>
    %c0_1 = arith.constant 0 : index
    %c0_2 = arith.constant 0 : index
    %c0_3 = arith.constant 0 : index
    %1 = vector.load %arg1[%c0_1, %c0_2, %c0_3] : memref<1x8x32xf32, #tpu.memory_space<vmem>>, vector<1x8x32xf32>
    %2 = vector.shape_cast %1 : vector<1x8x32xf32> to vector<8x32xf32>
    %3 = vector.extract_strided_slice %0 {offsets = [0, 0], sizes = [1, 32], strides = [1, 1]} : vector<2x128xf32> to vector<1x32xf32>
    %4 = vector.extract_strided_slice %0 {offsets = [0, 32], sizes = [1, 32], strides = [1, 1]} : vector<2x128xf32> to vector<1x32xf32>
    %cst = arith.constant dense<0.000000e+00> : vector<8xf32>
    %5 = vector.multi_reduction <add>, %2, %cst [1] : vector<8x32xf32> to vector<8xf32>
    %6 = vector.shape_cast %5 : vector<8xf32> to vector<8x1xf32>
    %cst_4 = arith.constant 3.200000e+01 : f32
    %7 = vector.broadcast %cst_4 : f32 to vector<8x1xf32>
    %8 = arith.divf %6, %7 : vector<8x1xf32>
    %9 = vector.broadcast %8 : vector<8x1xf32> to vector<8x32xf32>
    %10 = arith.subf %2, %9 : vector<8x32xf32>
    %11 = arith.mulf %10, %10 : vector<8x32xf32>
    %cst_5 = arith.constant dense<0.000000e+00> : vector<8xf32>
    %12 = vector.multi_reduction <add>, %11, %cst_5 [1] : vector<8x32xf32> to vector<8xf32>
    %13 = vector.shape_cast %12 : vector<8xf32> to vector<8x1xf32>
    %cst_6 = arith.constant 3.200000e+01 : f32
    %14 = vector.broadcast %cst_6 : f32 to vector<8x1xf32>
    %15 = arith.divf %13, %14 : vector<8x1xf32>
    %cst_7 = arith.constant 9.99999996E-13 : f32
    %16 = vector.broadcast %cst_7 : f32 to vector<8x1xf32>
    %17 = arith.addf %15, %16 : vector<8x1xf32>
    %18 = math.rsqrt %17 : vector<8x1xf32>
    %19 = vector.broadcast %18 : vector<8x1xf32> to vector<8x32xf32>
    %20 = arith.mulf %10, %19 : vector<8x32xf32>
    %21 = vector.broadcast %3 : vector<1x32xf32> to vector<8x32xf32>
    %22 = arith.mulf %20, %21 : vector<8x32xf32>
    %23 = vector.broadcast %4 : vector<1x32xf32> to vector<8x32xf32>
    %24 = arith.addf %22, %23 : vector<8x32xf32>
    %c0_8 = arith.constant 0 : index
    %c0_9 = arith.constant 0 : index
    %c0_10 = arith.constant 0 : index
    %25 = vector.load %arg2[%c0_8, %c0_9, %c0_10] : memref<1x1x8xf32, #tpu.memory_space<vmem>>, vector<1x1x8xf32>
    %26 = vector.shape_cast %25 : vector<1x1x8xf32> to vector<1x8xf32>
    %c0_11 = arith.constant 0 : index
    %c0_12 = arith.constant 0 : index
    %c0_13 = arith.constant 0 : index
    %27 = vector.load %arg3[%c0_11, %c0_12, %c0_13] : memref<2x32x128xbf16, #tpu.memory_space<vmem>>, vector<1x32x128xbf16>
    %28 = vector.shape_cast %27 : vector<1x32x128xbf16> to vector<32x128xbf16>
    %c0_14 = arith.constant 0 : index
    %c0_15 = arith.constant 0 : index
    %c0_16 = arith.constant 0 : index
    %29 = vector.load %arg4[%c0_14, %c0_15, %c0_16] : memref<2x96x64xbf16, #tpu.memory_space<vmem>>, vector<1x96x64xbf16>
    %30 = vector.shape_cast %29 : vector<1x96x64xbf16> to vector<96x64xbf16>
    %c0_17 = arith.constant 0 : index
    %c0_18 = arith.constant 0 : index
    %c0_19 = arith.constant 0 : index
    %31 = vector.load %arg5[%c0_17, %c0_18, %c0_19] : memref<2x3x128xf32, #tpu.memory_space<vmem>>, vector<1x3x128xf32>
    %32 = vector.shape_cast %31 : vector<1x3x128xf32> to vector<3x128xf32>
    %33 = arith.truncf %24 : vector<8x32xf32> to vector<8x32xbf16>
    %34 = vector.extract_strided_slice %28 {offsets = [0, 0], sizes = [32, 96], strides = [1, 1]} : vector<32x128xbf16> to vector<32x96xbf16>
    %cst_20 = arith.constant dense<0.000000e+00> : vector<8x96xf32>
    %35 = tpu.matmul %33, %34, %cst_20 {dimension_numbers = #tpu.dot_dimension_numbers<[1], [0], [0], [1], [0, 0, 1, 1], [], []>} : vector<8x32xbf16>, vector<32x96xbf16>, vector<8x96xf32> -> vector<8x96xf32>
    %36 = vector.extract_strided_slice %32 {offsets = [0, 0], sizes = [1, 96], strides = [1, 1]} : vector<3x128xf32> to vector<1x96xf32>
    %37 = vector.broadcast %36 : vector<1x96xf32> to vector<8x96xf32>
    %38 = arith.addf %35, %37 : vector<8x96xf32>
    %39 = vector.extract_strided_slice %38 {offsets = [0, 0], sizes = [8, 16], strides = [1, 1]} : vector<8x96xf32> to vector<8x16xf32>
    %cst_21 = arith.constant 2.500000e-01 : f32
    %40 = vector.broadcast %cst_21 : f32 to vector<8x16xf32>
    %41 = arith.mulf %39, %40 : vector<8x16xf32>
    %42 = arith.truncf %41 : vector<8x16xf32> to vector<8x16xbf16>
    %43 = vector.extract_strided_slice %38 {offsets = [0, 32], sizes = [8, 16], strides = [1, 1]} : vector<8x96xf32> to vector<8x16xf32>
    %44 = arith.truncf %43 : vector<8x16xf32> to vector<8x16xbf16>
    %45 = vector.extract_strided_slice %38 {offsets = [0, 64], sizes = [8, 16], strides = [1, 1]} : vector<8x96xf32> to vector<8x16xf32>
    %46 = arith.truncf %45 : vector<8x16xf32> to vector<8x16xbf16>
    %cst_22 = arith.constant dense<0.000000e+00> : vector<8x8xf32>
    %47 = tpu.matmul %42, %44, %cst_22 {dimension_numbers = #tpu.dot_dimension_numbers<[1], [1], [0], [0], [0, 0, 1, 0], [], []>} : vector<8x16xbf16>, vector<8x16xbf16>, vector<8x8xf32> -> vector<8x8xf32>
    %48 = vector.broadcast %26 : vector<1x8xf32> to vector<8x8xf32>
    %49 = arith.addf %47, %48 : vector<8x8xf32>
    %cst_23 = arith.constant dense<0xFF800000> : vector<8xf32>
    %50 = vector.multi_reduction <maximumf>, %49, %cst_23 [1] : vector<8x8xf32> to vector<8xf32>
    %51 = vector.shape_cast %50 : vector<8xf32> to vector<8x1xf32>
    %52 = vector.broadcast %51 : vector<8x1xf32> to vector<8x8xf32>
    %53 = arith.subf %49, %52 : vector<8x8xf32>
    %54 = math.exp %53 : vector<8x8xf32>
    %cst_24 = arith.constant dense<0.000000e+00> : vector<8xf32>
    %55 = vector.multi_reduction <add>, %54, %cst_24 [1] : vector<8x8xf32> to vector<8xf32>
    %56 = vector.shape_cast %55 : vector<8xf32> to vector<8x1xf32>
    %57 = tpu.reciprocal %56 {approx = true} : vector<8x1xf32> -> vector<8x1xf32>
    %58 = vector.broadcast %57 : vector<8x1xf32> to vector<8x8xf32>
    %59 = arith.mulf %54, %58 : vector<8x8xf32>
    %60 = arith.truncf %59 : vector<8x8xf32> to vector<8x8xbf16>
    %cst_25 = arith.constant dense<0.000000e+00> : vector<8x16xf32>
    %61 = tpu.matmul %60, %46, %cst_25 {dimension_numbers = #tpu.dot_dimension_numbers<[1], [0], [0], [1], [0, 0, 1, 1], [], []>} : vector<8x8xbf16>, vector<8x16xbf16>, vector<8x16xf32> -> vector<8x16xf32>
    %62 = vector.extract_strided_slice %38 {offsets = [0, 16], sizes = [8, 16], strides = [1, 1]} : vector<8x96xf32> to vector<8x16xf32>
    %cst_26 = arith.constant 2.500000e-01 : f32
    %63 = vector.broadcast %cst_26 : f32 to vector<8x16xf32>
    %64 = arith.mulf %62, %63 : vector<8x16xf32>
    %65 = arith.truncf %64 : vector<8x16xf32> to vector<8x16xbf16>
    %66 = vector.extract_strided_slice %38 {offsets = [0, 48], sizes = [8, 16], strides = [1, 1]} : vector<8x96xf32> to vector<8x16xf32>
    %67 = arith.truncf %66 : vector<8x16xf32> to vector<8x16xbf16>
    %68 = vector.extract_strided_slice %38 {offsets = [0, 80], sizes = [8, 16], strides = [1, 1]} : vector<8x96xf32> to vector<8x16xf32>
    %69 = arith.truncf %68 : vector<8x16xf32> to vector<8x16xbf16>
    %cst_27 = arith.constant dense<0.000000e+00> : vector<8x8xf32>
    %70 = tpu.matmul %65, %67, %cst_27 {dimension_numbers = #tpu.dot_dimension_numbers<[1], [1], [0], [0], [0, 0, 1, 0], [], []>} : vector<8x16xbf16>, vector<8x16xbf16>, vector<8x8xf32> -> vector<8x8xf32>
    %71 = vector.broadcast %26 : vector<1x8xf32> to vector<8x8xf32>
    %72 = arith.addf %70, %71 : vector<8x8xf32>
    %cst_28 = arith.constant dense<0xFF800000> : vector<8xf32>
    %73 = vector.multi_reduction <maximumf>, %72, %cst_28 [1] : vector<8x8xf32> to vector<8xf32>
    %74 = vector.shape_cast %73 : vector<8xf32> to vector<8x1xf32>
    %75 = vector.broadcast %74 : vector<8x1xf32> to vector<8x8xf32>
    %76 = arith.subf %72, %75 : vector<8x8xf32>
    %77 = math.exp %76 : vector<8x8xf32>
    %cst_29 = arith.constant dense<0.000000e+00> : vector<8xf32>
    %78 = vector.multi_reduction <add>, %77, %cst_29 [1] : vector<8x8xf32> to vector<8xf32>
    %79 = vector.shape_cast %78 : vector<8xf32> to vector<8x1xf32>
    %80 = tpu.reciprocal %79 {approx = true} : vector<8x1xf32> -> vector<8x1xf32>
    %81 = vector.broadcast %80 : vector<8x1xf32> to vector<8x8xf32>
    %82 = arith.mulf %77, %81 : vector<8x8xf32>
    %83 = arith.truncf %82 : vector<8x8xf32> to vector<8x8xbf16>
    %cst_30 = arith.constant dense<0.000000e+00> : vector<8x16xf32>
    %84 = tpu.matmul %83, %69, %cst_30 {dimension_numbers = #tpu.dot_dimension_numbers<[1], [0], [0], [1], [0, 0, 1, 1], [], []>} : vector<8x8xbf16>, vector<8x16xbf16>, vector<8x16xf32> -> vector<8x16xf32>
    %85 = tpu.concatenate %61, %84 in 1 : vector<8x16xf32>, vector<8x16xf32> -> vector<8x32xf32>
    %86 = arith.truncf %85 : vector<8x32xf32> to vector<8x32xbf16>
    %87 = vector.extract_strided_slice %28 {offsets = [0, 96], sizes = [32, 32], strides = [1, 1]} : vector<32x128xbf16> to vector<32x32xbf16>
    %cst_31 = arith.constant dense<0.000000e+00> : vector<8x32xf32>
    %88 = tpu.matmul %86, %87, %cst_31 {dimension_numbers = #tpu.dot_dimension_numbers<[1], [0], [0], [1], [0, 0, 1, 1], [], []>} : vector<8x32xbf16>, vector<32x32xbf16>, vector<8x32xf32> -> vector<8x32xf32>
    %89 = vector.extract_strided_slice %32 {offsets = [0, 96], sizes = [1, 32], strides = [1, 1]} : vector<3x128xf32> to vector<1x32xf32>
    %90 = vector.broadcast %89 : vector<1x32xf32> to vector<8x32xf32>
    %91 = arith.addf %88, %90 : vector<8x32xf32>
    %92 = arith.addf %24, %91 : vector<8x32xf32>
    %93 = vector.extract_strided_slice %32 {offsets = [1, 0], sizes = [1, 32], strides = [1, 1]} : vector<3x128xf32> to vector<1x32xf32>
    %94 = vector.extract_strided_slice %32 {offsets = [1, 32], sizes = [1, 32], strides = [1, 1]} : vector<3x128xf32> to vector<1x32xf32>
    %cst_32 = arith.constant dense<0.000000e+00> : vector<8xf32>
    %95 = vector.multi_reduction <add>, %92, %cst_32 [1] : vector<8x32xf32> to vector<8xf32>
    %96 = vector.shape_cast %95 : vector<8xf32> to vector<8x1xf32>
    %cst_33 = arith.constant 3.200000e+01 : f32
    %97 = vector.broadcast %cst_33 : f32 to vector<8x1xf32>
    %98 = arith.divf %96, %97 : vector<8x1xf32>
    %99 = vector.broadcast %98 : vector<8x1xf32> to vector<8x32xf32>
    %100 = arith.subf %92, %99 : vector<8x32xf32>
    %101 = arith.mulf %100, %100 : vector<8x32xf32>
    %cst_34 = arith.constant dense<0.000000e+00> : vector<8xf32>
    %102 = vector.multi_reduction <add>, %101, %cst_34 [1] : vector<8x32xf32> to vector<8xf32>
    %103 = vector.shape_cast %102 : vector<8xf32> to vector<8x1xf32>
    %cst_35 = arith.constant 3.200000e+01 : f32
    %104 = vector.broadcast %cst_35 : f32 to vector<8x1xf32>
    %105 = arith.divf %103, %104 : vector<8x1xf32>
    %cst_36 = arith.constant 9.99999996E-13 : f32
    %106 = vector.broadcast %cst_36 : f32 to vector<8x1xf32>
    %107 = arith.addf %105, %106 : vector<8x1xf32>
    %108 = math.rsqrt %107 : vector<8x1xf32>
    %109 = vector.broadcast %108 : vector<8x1xf32> to vector<8x32xf32>
    %110 = arith.mulf %100, %109 : vector<8x32xf32>
    %111 = vector.broadcast %93 : vector<1x32xf32> to vector<8x32xf32>
    %112 = arith.mulf %110, %111 : vector<8x32xf32>
    %113 = vector.broadcast %94 : vector<1x32xf32> to vector<8x32xf32>
    %114 = arith.addf %112, %113 : vector<8x32xf32>
    %115 = arith.truncf %114 : vector<8x32xf32> to vector<8x32xbf16>
    %116 = vector.extract_strided_slice %30 {offsets = [0, 0], sizes = [32, 64], strides = [1, 1]} : vector<96x64xbf16> to vector<32x64xbf16>
    %cst_37 = arith.constant dense<0.000000e+00> : vector<8x64xf32>
    %117 = tpu.matmul %115, %116, %cst_37 {dimension_numbers = #tpu.dot_dimension_numbers<[1], [0], [0], [1], [0, 0, 1, 1], [], []>} : vector<8x32xbf16>, vector<32x64xbf16>, vector<8x64xf32> -> vector<8x64xf32>
    %118 = vector.extract_strided_slice %32 {offsets = [2, 0], sizes = [1, 64], strides = [1, 1]} : vector<3x128xf32> to vector<1x64xf32>
    %119 = vector.broadcast %118 : vector<1x64xf32> to vector<8x64xf32>
    %120 = arith.addf %117, %119 : vector<8x64xf32>
    %cst_38 = arith.constant 5.000000e-01 : f32
    %121 = vector.broadcast %cst_38 : f32 to vector<8x64xf32>
    %122 = arith.mulf %121, %120 : vector<8x64xf32>
    %cst_39 = arith.constant 4.471500e-02 : f32
    %123 = vector.broadcast %cst_39 : f32 to vector<8x64xf32>
    %124 = arith.mulf %123, %120 : vector<8x64xf32>
    %125 = arith.mulf %124, %120 : vector<8x64xf32>
    %126 = arith.mulf %125, %120 : vector<8x64xf32>
    %127 = arith.addf %120, %126 : vector<8x64xf32>
    %cst_40 = arith.constant 0.797884583 : f32
    %128 = vector.broadcast %cst_40 : f32 to vector<8x64xf32>
    %129 = arith.mulf %128, %127 : vector<8x64xf32>
    %130 = math.tanh %129 : vector<8x64xf32>
    %cst_41 = arith.constant 1.000000e+00 : f32
    %131 = vector.broadcast %cst_41 : f32 to vector<8x64xf32>
    %132 = arith.addf %131, %130 : vector<8x64xf32>
    %133 = arith.mulf %122, %132 : vector<8x64xf32>
    %134 = arith.truncf %133 : vector<8x64xf32> to vector<8x64xbf16>
    %135 = vector.extract_strided_slice %30 {offsets = [32, 0], sizes = [64, 32], strides = [1, 1]} : vector<96x64xbf16> to vector<64x32xbf16>
    %cst_42 = arith.constant dense<0.000000e+00> : vector<8x32xf32>
    %136 = tpu.matmul %134, %135, %cst_42 {dimension_numbers = #tpu.dot_dimension_numbers<[1], [0], [0], [1], [0, 0, 1, 1], [], []>} : vector<8x64xbf16>, vector<64x32xbf16>, vector<8x32xf32> -> vector<8x32xf32>
    %137 = vector.extract_strided_slice %32 {offsets = [2, 64], sizes = [1, 32], strides = [1, 1]} : vector<3x128xf32> to vector<1x32xf32>
    %138 = vector.broadcast %137 : vector<1x32xf32> to vector<8x32xf32>
    %139 = arith.addf %136, %138 : vector<8x32xf32>
    %140 = arith.addf %114, %139 : vector<8x32xf32>
    %141 = vector.extract_strided_slice %32 {offsets = [1, 64], sizes = [1, 32], strides = [1, 1]} : vector<3x128xf32> to vector<1x32xf32>
    %142 = vector.extract_strided_slice %32 {offsets = [1, 96], sizes = [1, 32], strides = [1, 1]} : vector<3x128xf32> to vector<1x32xf32>
    %cst_43 = arith.constant dense<0.000000e+00> : vector<8xf32>
    %143 = vector.multi_reduction <add>, %140, %cst_43 [1] : vector<8x32xf32> to vector<8xf32>
    %144 = vector.shape_cast %143 : vector<8xf32> to vector<8x1xf32>
    %cst_44 = arith.constant 3.200000e+01 : f32
    %145 = vector.broadcast %cst_44 : f32 to vector<8x1xf32>
    %146 = arith.divf %144, %145 : vector<8x1xf32>
    %147 = vector.broadcast %146 : vector<8x1xf32> to vector<8x32xf32>
    %148 = arith.subf %140, %147 : vector<8x32xf32>
    %149 = arith.mulf %148, %148 : vector<8x32xf32>
    %cst_45 = arith.constant dense<0.000000e+00> : vector<8xf32>
    %150 = vector.multi_reduction <add>, %149, %cst_45 [1] : vector<8x32xf32> to vector<8xf32>
    %151 = vector.shape_cast %150 : vector<8xf32> to vector<8x1xf32>
    %cst_46 = arith.constant 3.200000e+01 : f32
    %152 = vector.broadcast %cst_46 : f32 to vector<8x1xf32>
    %153 = arith.divf %151, %152 : vector<8x1xf32>
    %cst_47 = arith.constant 9.99999996E-13 : f32
    %154 = vector.broadcast %cst_47 : f32 to vector<8x1xf32>
    %155 = arith.addf %153, %154 : vector<8x1xf32>
    %156 = math.rsqrt %155 : vector<8x1xf32>
    %157 = vector.broadcast %156 : vector<8x1xf32> to vector<8x32xf32>
    %158 = arith.mulf %148, %157 : vector<8x32xf32>
    %159 = vector.broadcast %141 : vector<1x32xf32> to vector<8x32xf32>
    %160 = arith.mulf %158, %159 : vector<8x32xf32>
    %161 = vector.broadcast %142 : vector<1x32xf32> to vector<8x32xf32>
    %162 = arith.addf %160, %161 : vector<8x32xf32>
    %c1 = arith.constant 1 : index
    %c0_48 = arith.constant 0 : index
    %c0_49 = arith.constant 0 : index
    %163 = vector.load %arg3[%c1, %c0_48, %c0_49] : memref<2x32x128xbf16, #tpu.memory_space<vmem>>, vector<1x32x128xbf16>
    %164 = vector.shape_cast %163 : vector<1x32x128xbf16> to vector<32x128xbf16>
    %c1_50 = arith.constant 1 : index
    %c0_51 = arith.constant 0 : index
    %c0_52 = arith.constant 0 : index
    %165 = vector.load %arg4[%c1_50, %c0_51, %c0_52] : memref<2x96x64xbf16, #tpu.memory_space<vmem>>, vector<1x96x64xbf16>
    %166 = vector.shape_cast %165 : vector<1x96x64xbf16> to vector<96x64xbf16>
    %c1_53 = arith.constant 1 : index
    %c0_54 = arith.constant 0 : index
    %c0_55 = arith.constant 0 : index
    %167 = vector.load %arg5[%c1_53, %c0_54, %c0_55] : memref<2x3x128xf32, #tpu.memory_space<vmem>>, vector<1x3x128xf32>
    %168 = vector.shape_cast %167 : vector<1x3x128xf32> to vector<3x128xf32>
    %169 = arith.truncf %162 : vector<8x32xf32> to vector<8x32xbf16>
    %170 = vector.extract_strided_slice %164 {offsets = [0, 0], sizes = [32, 96], strides = [1, 1]} : vector<32x128xbf16> to vector<32x96xbf16>
    %cst_56 = arith.constant dense<0.000000e+00> : vector<8x96xf32>
    %171 = tpu.matmul %169, %170, %cst_56 {dimension_numbers = #tpu.dot_dimension_numbers<[1], [0], [0], [1], [0, 0, 1, 1], [], []>} : vector<8x32xbf16>, vector<32x96xbf16>, vector<8x96xf32> -> vector<8x96xf32>
    %172 = vector.extract_strided_slice %168 {offsets = [0, 0], sizes = [1, 96], strides = [1, 1]} : vector<3x128xf32> to vector<1x96xf32>
    %173 = vector.broadcast %172 : vector<1x96xf32> to vector<8x96xf32>
    %174 = arith.addf %171, %173 : vector<8x96xf32>
    %175 = vector.extract_strided_slice %174 {offsets = [0, 0], sizes = [8, 16], strides = [1, 1]} : vector<8x96xf32> to vector<8x16xf32>
    %cst_57 = arith.constant 2.500000e-01 : f32
    %176 = vector.broadcast %cst_57 : f32 to vector<8x16xf32>
    %177 = arith.mulf %175, %176 : vector<8x16xf32>
    %178 = arith.truncf %177 : vector<8x16xf32> to vector<8x16xbf16>
    %179 = vector.extract_strided_slice %174 {offsets = [0, 32], sizes = [8, 16], strides = [1, 1]} : vector<8x96xf32> to vector<8x16xf32>
    %180 = arith.truncf %179 : vector<8x16xf32> to vector<8x16xbf16>
    %181 = vector.extract_strided_slice %174 {offsets = [0, 64], sizes = [8, 16], strides = [1, 1]} : vector<8x96xf32> to vector<8x16xf32>
    %182 = arith.truncf %181 : vector<8x16xf32> to vector<8x16xbf16>
    %cst_58 = arith.constant dense<0.000000e+00> : vector<8x8xf32>
    %183 = tpu.matmul %178, %180, %cst_58 {dimension_numbers = #tpu.dot_dimension_numbers<[1], [1], [0], [0], [0, 0, 1, 0], [], []>} : vector<8x16xbf16>, vector<8x16xbf16>, vector<8x8xf32> -> vector<8x8xf32>
    %184 = vector.broadcast %26 : vector<1x8xf32> to vector<8x8xf32>
    %185 = arith.addf %183, %184 : vector<8x8xf32>
    %cst_59 = arith.constant dense<0xFF800000> : vector<8xf32>
    %186 = vector.multi_reduction <maximumf>, %185, %cst_59 [1] : vector<8x8xf32> to vector<8xf32>
    %187 = vector.shape_cast %186 : vector<8xf32> to vector<8x1xf32>
    %188 = vector.broadcast %187 : vector<8x1xf32> to vector<8x8xf32>
    %189 = arith.subf %185, %188 : vector<8x8xf32>
    %190 = math.exp %189 : vector<8x8xf32>
    %cst_60 = arith.constant dense<0.000000e+00> : vector<8xf32>
    %191 = vector.multi_reduction <add>, %190, %cst_60 [1] : vector<8x8xf32> to vector<8xf32>
    %192 = vector.shape_cast %191 : vector<8xf32> to vector<8x1xf32>
    %193 = tpu.reciprocal %192 {approx = true} : vector<8x1xf32> -> vector<8x1xf32>
    %194 = vector.broadcast %193 : vector<8x1xf32> to vector<8x8xf32>
    %195 = arith.mulf %190, %194 : vector<8x8xf32>
    %196 = arith.truncf %195 : vector<8x8xf32> to vector<8x8xbf16>
    %cst_61 = arith.constant dense<0.000000e+00> : vector<8x16xf32>
    %197 = tpu.matmul %196, %182, %cst_61 {dimension_numbers = #tpu.dot_dimension_numbers<[1], [0], [0], [1], [0, 0, 1, 1], [], []>} : vector<8x8xbf16>, vector<8x16xbf16>, vector<8x16xf32> -> vector<8x16xf32>
    %198 = vector.extract_strided_slice %174 {offsets = [0, 16], sizes = [8, 16], strides = [1, 1]} : vector<8x96xf32> to vector<8x16xf32>
    %cst_62 = arith.constant 2.500000e-01 : f32
    %199 = vector.broadcast %cst_62 : f32 to vector<8x16xf32>
    %200 = arith.mulf %198, %199 : vector<8x16xf32>
    %201 = arith.truncf %200 : vector<8x16xf32> to vector<8x16xbf16>
    %202 = vector.extract_strided_slice %174 {offsets = [0, 48], sizes = [8, 16], strides = [1, 1]} : vector<8x96xf32> to vector<8x16xf32>
    %203 = arith.truncf %202 : vector<8x16xf32> to vector<8x16xbf16>
    %204 = vector.extract_strided_slice %174 {offsets = [0, 80], sizes = [8, 16], strides = [1, 1]} : vector<8x96xf32> to vector<8x16xf32>
    %205 = arith.truncf %204 : vector<8x16xf32> to vector<8x16xbf16>
    %cst_63 = arith.constant dense<0.000000e+00> : vector<8x8xf32>
    %206 = tpu.matmul %201, %203, %cst_63 {dimension_numbers = #tpu.dot_dimension_numbers<[1], [1], [0], [0], [0, 0, 1, 0], [], []>} : vector<8x16xbf16>, vector<8x16xbf16>, vector<8x8xf32> -> vector<8x8xf32>
    %207 = vector.broadcast %26 : vector<1x8xf32> to vector<8x8xf32>
    %208 = arith.addf %206, %207 : vector<8x8xf32>
    %cst_64 = arith.constant dense<0xFF800000> : vector<8xf32>
    %209 = vector.multi_reduction <maximumf>, %208, %cst_64 [1] : vector<8x8xf32> to vector<8xf32>
    %210 = vector.shape_cast %209 : vector<8xf32> to vector<8x1xf32>
    %211 = vector.broadcast %210 : vector<8x1xf32> to vector<8x8xf32>
    %212 = arith.subf %208, %211 : vector<8x8xf32>
    %213 = math.exp %212 : vector<8x8xf32>
    %cst_65 = arith.constant dense<0.000000e+00> : vector<8xf32>
    %214 = vector.multi_reduction <add>, %213, %cst_65 [1] : vector<8x8xf32> to vector<8xf32>
    %215 = vector.shape_cast %214 : vector<8xf32> to vector<8x1xf32>
    %216 = tpu.reciprocal %215 {approx = true} : vector<8x1xf32> -> vector<8x1xf32>
    %217 = vector.broadcast %216 : vector<8x1xf32> to vector<8x8xf32>
    %218 = arith.mulf %213, %217 : vector<8x8xf32>
    %219 = arith.truncf %218 : vector<8x8xf32> to vector<8x8xbf16>
    %cst_66 = arith.constant dense<0.000000e+00> : vector<8x16xf32>
    %220 = tpu.matmul %219, %205, %cst_66 {dimension_numbers = #tpu.dot_dimension_numbers<[1], [0], [0], [1], [0, 0, 1, 1], [], []>} : vector<8x8xbf16>, vector<8x16xbf16>, vector<8x16xf32> -> vector<8x16xf32>
    %221 = tpu.concatenate %197, %220 in 1 : vector<8x16xf32>, vector<8x16xf32> -> vector<8x32xf32>
    %222 = arith.truncf %221 : vector<8x32xf32> to vector<8x32xbf16>
    %223 = vector.extract_strided_slice %164 {offsets = [0, 96], sizes = [32, 32], strides = [1, 1]} : vector<32x128xbf16> to vector<32x32xbf16>
    %cst_67 = arith.constant dense<0.000000e+00> : vector<8x32xf32>
    %224 = tpu.matmul %222, %223, %cst_67 {dimension_numbers = #tpu.dot_dimension_numbers<[1], [0], [0], [1], [0, 0, 1, 1], [], []>} : vector<8x32xbf16>, vector<32x32xbf16>, vector<8x32xf32> -> vector<8x32xf32>
    %225 = vector.extract_strided_slice %168 {offsets = [0, 96], sizes = [1, 32], strides = [1, 1]} : vector<3x128xf32> to vector<1x32xf32>
    %226 = vector.broadcast %225 : vector<1x32xf32> to vector<8x32xf32>
    %227 = arith.addf %224, %226 : vector<8x32xf32>
    %228 = arith.addf %162, %227 : vector<8x32xf32>
    %229 = vector.extract_strided_slice %168 {offsets = [1, 0], sizes = [1, 32], strides = [1, 1]} : vector<3x128xf32> to vector<1x32xf32>
    %230 = vector.extract_strided_slice %168 {offsets = [1, 32], sizes = [1, 32], strides = [1, 1]} : vector<3x128xf32> to vector<1x32xf32>
    %cst_68 = arith.constant dense<0.000000e+00> : vector<8xf32>
    %231 = vector.multi_reduction <add>, %228, %cst_68 [1] : vector<8x32xf32> to vector<8xf32>
    %232 = vector.shape_cast %231 : vector<8xf32> to vector<8x1xf32>
    %cst_69 = arith.constant 3.200000e+01 : f32
    %233 = vector.broadcast %cst_69 : f32 to vector<8x1xf32>
    %234 = arith.divf %232, %233 : vector<8x1xf32>
    %235 = vector.broadcast %234 : vector<8x1xf32> to vector<8x32xf32>
    %236 = arith.subf %228, %235 : vector<8x32xf32>
    %237 = arith.mulf %236, %236 : vector<8x32xf32>
    %cst_70 = arith.constant dense<0.000000e+00> : vector<8xf32>
    %238 = vector.multi_reduction <add>, %237, %cst_70 [1] : vector<8x32xf32> to vector<8xf32>
    %239 = vector.shape_cast %238 : vector<8xf32> to vector<8x1xf32>
    %cst_71 = arith.constant 3.200000e+01 : f32
    %240 = vector.broadcast %cst_71 : f32 to vector<8x1xf32>
    %241 = arith.divf %239, %240 : vector<8x1xf32>
    %cst_72 = arith.constant 9.99999996E-13 : f32
    %242 = vector.broadcast %cst_72 : f32 to vector<8x1xf32>
    %243 = arith.addf %241, %242 : vector<8x1xf32>
    %244 = math.rsqrt %243 : vector<8x1xf32>
    %245 = vector.broadcast %244 : vector<8x1xf32> to vector<8x32xf32>
    %246 = arith.mulf %236, %245 : vector<8x32xf32>
    %247 = vector.broadcast %229 : vector<1x32xf32> to vector<8x32xf32>
    %248 = arith.mulf %246, %247 : vector<8x32xf32>
    %249 = vector.broadcast %230 : vector<1x32xf32> to vector<8x32xf32>
    %250 = arith.addf %248, %249 : vector<8x32xf32>
    %251 = arith.truncf %250 : vector<8x32xf32> to vector<8x32xbf16>
    %252 = vector.extract_strided_slice %166 {offsets = [0, 0], sizes = [32, 64], strides = [1, 1]} : vector<96x64xbf16> to vector<32x64xbf16>
    %cst_73 = arith.constant dense<0.000000e+00> : vector<8x64xf32>
    %253 = tpu.matmul %251, %252, %cst_73 {dimension_numbers = #tpu.dot_dimension_numbers<[1], [0], [0], [1], [0, 0, 1, 1], [], []>} : vector<8x32xbf16>, vector<32x64xbf16>, vector<8x64xf32> -> vector<8x64xf32>
    %254 = vector.extract_strided_slice %168 {offsets = [2, 0], sizes = [1, 64], strides = [1, 1]} : vector<3x128xf32> to vector<1x64xf32>
    %255 = vector.broadcast %254 : vector<1x64xf32> to vector<8x64xf32>
    %256 = arith.addf %253, %255 : vector<8x64xf32>
    %cst_74 = arith.constant 5.000000e-01 : f32
    %257 = vector.broadcast %cst_74 : f32 to vector<8x64xf32>
    %258 = arith.mulf %257, %256 : vector<8x64xf32>
    %cst_75 = arith.constant 4.471500e-02 : f32
    %259 = vector.broadcast %cst_75 : f32 to vector<8x64xf32>
    %260 = arith.mulf %259, %256 : vector<8x64xf32>
    %261 = arith.mulf %260, %256 : vector<8x64xf32>
    %262 = arith.mulf %261, %256 : vector<8x64xf32>
    %263 = arith.addf %256, %262 : vector<8x64xf32>
    %cst_76 = arith.constant 0.797884583 : f32
    %264 = vector.broadcast %cst_76 : f32 to vector<8x64xf32>
    %265 = arith.mulf %264, %263 : vector<8x64xf32>
    %266 = math.tanh %265 : vector<8x64xf32>
    %cst_77 = arith.constant 1.000000e+00 : f32
    %267 = vector.broadcast %cst_77 : f32 to vector<8x64xf32>
    %268 = arith.addf %267, %266 : vector<8x64xf32>
    %269 = arith.mulf %258, %268 : vector<8x64xf32>
    %270 = arith.truncf %269 : vector<8x64xf32> to vector<8x64xbf16>
    %271 = vector.extract_strided_slice %166 {offsets = [32, 0], sizes = [64, 32], strides = [1, 1]} : vector<96x64xbf16> to vector<64x32xbf16>
    %cst_78 = arith.constant dense<0.000000e+00> : vector<8x32xf32>
    %272 = tpu.matmul %270, %271, %cst_78 {dimension_numbers = #tpu.dot_dimension_numbers<[1], [0], [0], [1], [0, 0, 1, 1], [], []>} : vector<8x64xbf16>, vector<64x32xbf16>, vector<8x32xf32> -> vector<8x32xf32>
    %273 = vector.extract_strided_slice %168 {offsets = [2, 64], sizes = [1, 32], strides = [1, 1]} : vector<3x128xf32> to vector<1x32xf32>
    %274 = vector.broadcast %273 : vector<1x32xf32> to vector<8x32xf32>
    %275 = arith.addf %272, %274 : vector<8x32xf32>
    %276 = arith.addf %250, %275 : vector<8x32xf32>
    %277 = vector.extract_strided_slice %168 {offsets = [1, 64], sizes = [1, 32], strides = [1, 1]} : vector<3x128xf32> to vector<1x32xf32>
    %278 = vector.extract_strided_slice %168 {offsets = [1, 96], sizes = [1, 32], strides = [1, 1]} : vector<3x128xf32> to vector<1x32xf32>
    %cst_79 = arith.constant dense<0.000000e+00> : vector<8xf32>
    %279 = vector.multi_reduction <add>, %276, %cst_79 [1] : vector<8x32xf32> to vector<8xf32>
    %280 = vector.shape_cast %279 : vector<8xf32> to vector<8x1xf32>
    %cst_80 = arith.constant 3.200000e+01 : f32
    %281 = vector.broadcast %cst_80 : f32 to vector<8x1xf32>
    %282 = arith.divf %280, %281 : vector<8x1xf32>
    %283 = vector.broadcast %282 : vector<8x1xf32> to vector<8x32xf32>
    %284 = arith.subf %276, %283 : vector<8x32xf32>
    %285 = arith.mulf %284, %284 : vector<8x32xf32>
    %cst_81 = arith.constant dense<0.000000e+00> : vector<8xf32>
    %286 = vector.multi_reduction <add>, %285, %cst_81 [1] : vector<8x32xf32> to vector<8xf32>
    %287 = vector.shape_cast %286 : vector<8xf32> to vector<8x1xf32>
    %cst_82 = arith.constant 3.200000e+01 : f32
    %288 = vector.broadcast %cst_82 : f32 to vector<8x1xf32>
    %289 = arith.divf %287, %288 : vector<8x1xf32>
    %cst_83 = arith.constant 9.99999996E-13 : f32
    %290 = vector.broadcast %cst_83 : f32 to vector<8x1xf32>
    %291 = arith.addf %289, %290 : vector<8x1xf32>
    %292 = math.rsqrt %291 : vector<8x1xf32>
    %293 = vector.broadcast %292 : vector<8x1xf32> to vector<8x32xf32>
    %294 = arith.mulf %284, %293 : vector<8x32xf32>
    %295 = vector.broadcast %277 : vector<1x32xf32> to vector<8x32xf32>
    %296 = arith.mulf %294, %295 : vector<8x32xf32>
    %297 = vector.broadcast %278 : vector<1x32xf32> to vector<8x32xf32>
    %298 = arith.addf %296, %297 : vector<8x32xf32>
    %299 = vector.extract_strided_slice %298 {offsets = [0, 0], sizes = [1, 32], strides = [1, 1]} : vector<8x32xf32> to vector<1x32xf32>
    %300 = arith.truncf %299 : vector<1x32xf32> to vector<1x32xbf16>
    %c0_84 = arith.constant 0 : index
    %c0_85 = arith.constant 0 : index
    %301 = vector.load %arg6[%c0_84, %c0_85] : memref<32x128xbf16, #tpu.memory_space<vmem>>, vector<32x128xbf16>
    %cst_86 = arith.constant dense<0.000000e+00> : vector<1x128xf32>
    %302 = tpu.matmul %300, %301, %cst_86 {dimension_numbers = #tpu.dot_dimension_numbers<[1], [0], [0], [1], [0, 0, 1, 1], [], []>} : vector<1x32xbf16>, vector<32x128xbf16>, vector<1x128xf32> -> vector<1x128xf32>
    %303 = vector.extract_strided_slice %0 {offsets = [1, 0], sizes = [1, 128], strides = [1, 1]} : vector<2x128xf32> to vector<1x128xf32>
    %304 = arith.addf %302, %303 : vector<1x128xf32>
    %c0_87 = arith.constant 0 : index
    %c0_88 = arith.constant 0 : index
    %c0_89 = arith.constant 0 : index
    %305 = vector.load %arg8[%c0_87, %c0_88, %c0_89] : memref<1x1x128xf32, #tpu.memory_space<vmem>>, vector<1x1x128xf32>
    %306 = vector.shape_cast %305 : vector<1x1x128xf32> to vector<1x128xf32>
    %307 = vector.shape_cast %304 : vector<1x128xf32> to vector<1x1x128xf32>
    tpu.vector_store %arg8[%c0_87, %c0_88, %c0_89], %307 {strides = array<i32>} : memref<1x1x128xf32, #tpu.memory_space<vmem>>, vector<1x1x128xf32>,
    return
  }
  func.func @transform_0(%arg0: i32) -> (i32, i32, i32) {
    %c0_i32 = arith.constant 0 : i32
    %c0_i32_0 = arith.constant 0 : i32
    %c0_i32_1 = arith.constant 0 : i32
    return %arg0, %c0_i32, %c0_i32_0 : i32, i32, i32
  }
  func.func @transform_1(%arg0: i32) -> (i32, i32, i32) {
    %c0_i32 = arith.constant 0 : i32
    %c0_i32_0 = arith.constant 0 : i32
    %c0_i32_1 = arith.constant 0 : i32
    return %arg0, %c0_i32, %c0_i32_0 : i32, i32, i32
  }
  func.func @transform_2(%arg0: i32) -> (i32, i32, i32) {
    %c0_i32 = arith.constant 0 : i32
    %c0_i32_0 = arith.constant 0 : i32
    %c0_i32_1 = arith.constant 0 : i32
    %c0_i32_2 = arith.constant 0 : i32
    return %c0_i32, %c0_i32_0, %c0_i32_1 : i32, i32, i32
  }
  func.func @transform_3(%arg0: i32) -> (i32, i32, i32) {
    %c0_i32 = arith.constant 0 : i32
    %c0_i32_0 = arith.constant 0 : i32
    %c0_i32_1 = arith.constant 0 : i32
    %c0_i32_2 = arith.constant 0 : i32
    return %c0_i32, %c0_i32_0, %c0_i32_1 : i32, i32, i32
  }
  func.func @transform_4(%arg0: i32) -> (i32, i32, i32) {
    %c0_i32 = arith.constant 0 : i32
    %c0_i32_0 = arith.constant 0 : i32
    %c0_i32_1 = arith.constant 0 : i32
    %c0_i32_2 = arith.constant 0 : i32
    return %c0_i32, %c0_i32_0, %c0_i32_1 : i32, i32, i32
  }
  func.func @transform_5(%arg0: i32) -> (i32, i32) {
    %c0_i32 = arith.constant 0 : i32
    %c0_i32_0 = arith.constant 0 : i32
    %c0_i32_1 = arith.constant 0 : i32
    return %c0_i32, %c0_i32_0 : i32, i32
  }
  func.func @transform_6(%arg0: i32) -> (i32, i32) {
    %c0_i32 = arith.constant 0 : i32
    %c0_i32_0 = arith.constant 0 : i32
    %c0_i32_1 = arith.constant 0 : i32
    return %c0_i32, %c0_i32_0 : i32, i32
  }
  func.func @transform_7(%arg0: i32) -> (i32, i32, i32) {
    %c0_i32 = arith.constant 0 : i32
    %c0_i32_0 = arith.constant 0 : i32
    %c0_i32_1 = arith.constant 0 : i32
    return %arg0, %c0_i32, %c0_i32_0 : i32, i32, i32
  }
}

</mosaic_0001>

<llo_original>
// kernel: transformer_model_forward.1
$region0: #{transformer_model_forward.1}
  #allocation0 [shape = 'u32[]', space=smem, size = 0x4, offset = 0x4, fixed_abs, tag = 'smem constant byte address 0x4 - core index']
  #allocation1 [shape = 'u32[144,128]{1,0:T(1,128)}', space=vmem, size = 0x12000, scoped, tag = 'internal scratch']
  %s0 = inlined_call_operand.vmem [shape: f32[2,8,32], index: 0, kind: input, shape index: {}]
  %s1 = inlined_call_operand.vmem [shape: f32[2,1,8], index: 1, kind: input, shape index: {}]
  %s2 = inlined_call_operand.vmem [shape: bf16[2,32,128], index: 2, kind: input, shape index: {}]
  %s3 = inlined_call_operand.vmem [shape: bf16[2,96,64], index: 3, kind: input, shape index: {}]
  %s4 = inlined_call_operand.vmem [shape: f32[2,3,128], index: 4, kind: input, shape index: {}]
  %s5 = inlined_call_operand.vmem [shape: bf16[32,128], index: 5, kind: input, shape index: {}]
  %s6 = inlined_call_operand.vmem [shape: f32[2,128], index: 6, kind: input, shape index: {}]
  %s7 = inlined_call_operand.hbm [shape: f32[2,1,128], index: 7, kind: output, shape index: {}]
  %s8 = sld [smem:[#allocation0]]
  $region61: #{transformer_model_forward.1} parent=0
    _
  %s10 = ssub.s32 1, %s8
  %s11 = scalar_select 0, %s10, %s8
  $region1: #{transformer_model_forward.1} parent=0
    #allocation2 [shape = 'u8[1024]{0}', space=vmem, size = 0x400, scoped, tag = 'output window, operand 0']
    #allocation3 [shape = 's32[2]{0}', space=sflag, size = 0x8, scoped, tag = 'scoped memory for transformer_model_forward.1']
    %12 = vsyncpa [#allocation3], 0
    %s13 = scalar_lea.sflag [#allocation3], 1
    %14 = vsyncpa %s13, 0
    loop: start=0, step=1, limit=4
    $region2: #{transformer_model_forward.1} parent=1 // loop_pre_header
      _
    $region3: #{transformer_model_forward.1} parent=1 // loop_header
      %s16 = sphi 0, %s20
      %p17 = scmp.ge.s32.totalorder %s16, 4
      %s26 = sphi 0, %s28
      %s29 = sphi 0, %s26
      %s30 = sphi 0, %s29
      %s46 = sphi 0, %s30
      %s52 = sphi 0, %s54
      %s55 = sphi 0, %s52
      %s56 = sphi 0, %s55
      %s72 = sphi 0, %s56
      %s76 = sphi 0, %s76
      %s78 = sphi 0, %s76
      %s79 = sphi 0, %s78
      %s93 = sphi 0, %s79
      %s97 = sphi 0, %s97
      %s99 = sphi 0, %s97
      %s100 = sphi 0, %s99
      %s114 = sphi 0, %s100
      %s118 = sphi 0, %s118
      %s120 = sphi 0, %s118
      %s121 = sphi 0, %s120
      %s135 = sphi 0, %s121
      %s139 = sphi 0, %s139
      %s141 = sphi 0, %s139
      %s142 = sphi 0, %s141
      %s156 = sphi 0, %s142
      %s160 = sphi 0, %s160
      %s162 = sphi 0, %s160
      %s163 = sphi 0, %s162
      %s177 = sphi 0, %s163
      %s183 = sphi 0, %s185
      %s186 = sphi 0, %s183
      %s187 = sphi 0, %s186
      %s203 = sphi 0, %s187
    $region4: #{transformer_model_forward.1} parent=1 // loop_header_branch
      %19 = sbr.rel (%p17) target = $region8
    $region5: #{transformer_model_forward.1} parent=1 // loop_body
      %s21 = ssub.s32 %s16, 1
      %s22 = ssub.s32 %s16, 2
      %s23 = sadd.s32 %s16, 1
      %s24 = ssub.s32 %s16, %s23
      %p25 = scmp.eq.s32.totalorder %s24, 0
      %s27 = sadd.s32 %s26, 1
      %s28 = scalar_select %p25, %s26, %s27
      %p31 = pneg %p25
      %p32 = scmp.eq.s32.totalorder %s16, 1
      %p33 = por %p31, %p32
      %p34 = scmp.ne.s32.totalorder %s26, %s29
      %p35 = scmp.eq.s32.totalorder %s16, 0
      %p36 = por %p34, %p35
      %p37 = scmp.ne.s32.totalorder %s26, %s29
      %p38 = scmp.eq.s32.totalorder %s21, 1
      %p39 = por %p37, %p38
      %p40 = scmp.ne.s32.totalorder %s29, %s30
      %p41 = scmp.eq.s32.totalorder %s21, 0
      %p42 = por %p40, %p41
      %p43 = scmp.ne.s32.totalorder %s29, %s30
      %p44 = scmp.eq.s32.totalorder %s22, 1
      %p45 = por %p43, %p44
      %p47 = scmp.ne.s32.totalorder %s30, %s46
      %p48 = scmp.eq.s32.totalorder %s22, 0
      %p49 = por %p47, %p48
      %s50 = ssub.s32 %s16, %s23
      %p51 = scmp.eq.s32.totalorder %s50, 0
      %s53 = sadd.s32 %s52, 1
      %s54 = scalar_select %p51, %s52, %s53
      %p57 = pneg %p51
      %p58 = scmp.eq.s32.totalorder %s16, 1
      %p59 = por %p57, %p58
      %p60 = scmp.ne.s32.totalorder %s52, %s55
      %p61 = scmp.eq.s32.totalorder %s16, 0
      %p62 = por %p60, %p61
      %p63 = scmp.ne.s32.totalorder %s52, %s55
      %p64 = scmp.eq.s32.totalorder %s21, 1
      %p65 = por %p63, %p64
      %p66 = scmp.ne.s32.totalorder %s55, %s56
      %p67 = scmp.eq.s32.totalorder %s21, 0
      %p68 = por %p66, %p67
      %p69 = scmp.ne.s32.totalorder %s55, %s56
      %p70 = scmp.eq.s32.totalorder %s22, 1
      %p71 = por %p69, %p70
      %p73 = scmp.ne.s32.totalorder %s56, %s72
      %p74 = scmp.eq.s32.totalorder %s22, 0
      %p75 = por %p73, %p74
      %s77 = sadd.s32 %s76, 1
      %p80 = scmp.eq.s32.totalorder %s16, 1
      %p81 = scmp.ne.s32.totalorder %s76, %s78
      %p82 = scmp.eq.s32.totalorder %s16, 0
      %p83 = por %p81, %p82
      %p84 = scmp.ne.s32.totalorder %s76, %s78
      %p85 = scmp.eq.s32.totalorder %s21, 1
      %p86 = por %p84, %p85
      %p87 = scmp.ne.s32.totalorder %s78, %s79
      %p88 = scmp.eq.s32.totalorder %s21, 0
      %p89 = por %p87, %p88
      %p90 = scmp.ne.s32.totalorder %s78, %s79
      %p91 = scmp.eq.s32.totalorder %s22, 1
      %p92 = por %p90, %p91
      %p94 = scmp.ne.s32.totalorder %s79, %s93
      %p95 = scmp.eq.s32.totalorder %s22, 0
      %p96 = por %p94, %p95
      %s98 = sadd.s32 %s97, 1
      %p101 = scmp.eq.s32.totalorder %s16, 1
      %p102 = scmp.ne.s32.totalorder %s97, %s99
      %p103 = scmp.eq.s32.totalorder %s16, 0
      %p104 = por %p102, %p103
      %p105 = scmp.ne.s32.totalorder %s97, %s99
      %p106 = scmp.eq.s32.totalorder %s21, 1
      %p107 = por %p105, %p106
      %p108 = scmp.ne.s32.totalorder %s99, %s100
      %p109 = scmp.eq.s32.totalorder %s21, 0
      %p110 = por %p108, %p109
      %p111 = scmp.ne.s32.totalorder %s99, %s100
      %p112 = scmp.eq.s32.totalorder %s22, 1
      %p113 = por %p111, %p112
      %p115 = scmp.ne.s32.totalorder %s100, %s114
      %p116 = scmp.eq.s32.totalorder %s22, 0
      %p117 = por %p115, %p116
      %s119 = sadd.s32 %s118, 1
      %p122 = scmp.eq.s32.totalorder %s16, 1
      %p123 = scmp.ne.s32.totalorder %s118, %s120
      %p124 = scmp.eq.s32.totalorder %s16, 0
      %p125 = por %p123, %p124
      %p126 = scmp.ne.s32.totalorder %s118, %s120
      %p127 = scmp.eq.s32.totalorder %s21, 1
      %p128 = por %p126, %p127
      %p129 = scmp.ne.s32.totalorder %s120, %s121
      %p130 = scmp.eq.s32.totalorder %s21, 0
      %p131 = por %p129, %p130
      %p132 = scmp.ne.s32.totalorder %s120, %s121
      %p133 = scmp.eq.s32.totalorder %s22, 1
      %p134 = por %p132, %p133
      %p136 = scmp.ne.s32.totalorder %s121, %s135
      %p137 = scmp.eq.s32.totalorder %s22, 0
      %p138 = por %p136, %p137
      %s140 = sadd.s32 %s139, 1
      %p143 = scmp.eq.s32.totalorder %s16, 1
      %p144 = scmp.ne.s32.totalorder %s139, %s141
      %p145 = scmp.eq.s32.totalorder %s16, 0
      %p146 = por %p144, %p145
      %p147 = scmp.ne.s32.totalorder %s139, %s141
      %p148 = scmp.eq.s32.totalorder %s21, 1
      %p149 = por %p147, %p148
      %p150 = scmp.ne.s32.totalorder %s141, %s142
      %p151 = scmp.eq.s32.totalorder %s21, 0
      %p152 = por %p150, %p151
      %p153 = scmp.ne.s32.totalorder %s141, %s142
      %p154 = scmp.eq.s32.totalorder %s22, 1
      %p155 = por %p153, %p154
      %p157 = scmp.ne.s32.totalorder %s142, %s156
      %p158 = scmp.eq.s32.totalorder %s22, 0
      %p159 = por %p157, %p158
      %s161 = sadd.s32 %s160, 1
      %p164 = scmp.eq.s32.totalorder %s16, 1
      %p165 = scmp.ne.s32.totalorder %s160, %s162
      %p166 = scmp.eq.s32.totalorder %s16, 0
      %p167 = por %p165, %p166
      %p168 = scmp.ne.s32.totalorder %s160, %s162
      %p169 = scmp.eq.s32.totalorder %s21, 1
      %p170 = por %p168, %p169
      %p171 = scmp.ne.s32.totalorder %s162, %s163
      %p172 = scmp.eq.s32.totalorder %s21, 0
      %p173 = por %p171, %p172
      %p174 = scmp.ne.s32.totalorder %s162, %s163
      %p175 = scmp.eq.s32.totalorder %s22, 1
      %p176 = por %p174, %p175
      %p178 = scmp.ne.s32.totalorder %s163, %s177
      %p179 = scmp.eq.s32.totalorder %s22, 0
      %p180 = por %p178, %p179
      %s181 = ssub.s32 %s16, %s23
      %p182 = scmp.eq.s32.totalorder %s181, 0
      %s184 = sadd.s32 %s183, 1
      %s185 = scalar_select %p182, %s183, %s184
      %p188 = pneg %p182
      %p189 = scmp.eq.s32.totalorder %s16, 1
      %p190 = por %p188, %p189
      %p191 = scmp.ne.s32.totalorder %s183, %s186
      %p192 = scmp.eq.s32.totalorder %s16, 0
      %p193 = por %p191, %p192
      %p194 = scmp.ne.s32.totalorder %s183, %s186
      %p195 = scmp.eq.s32.totalorder %s21, 1
      %p196 = por %p194, %p195
      %p197 = scmp.ne.s32.totalorder %s186, %s187
      %p198 = scmp.eq.s32.totalorder %s21, 0
      %p199 = por %p197, %p198
      %p200 = scmp.ne.s32.totalorder %s186, %s187
      %p201 = scmp.eq.s32.totalorder %s22, 1
      %p202 = por %p200, %p201
      %p204 = scmp.ne.s32.totalorder %s187, %s203
      %p205 = scmp.eq.s32.totalorder %s22, 0
      %p206 = por %p204, %p205
      %p207 = scmp.le.s32.totalorder 1, %s16
      %p208 = scmp.lt.s32.totalorder %s16, 3
      %p209 = pnand %p207, %p208
      %p210 = pneg %p209
      // Predicated region
      $region9: #{transformer_model_forward.1} parent=5 // pred_check
        _
      $region10: #{transformer_model_forward.1} parent=5 // pred_check_branch
        %212 = sbr.rel (%p209) target = $region12
      $region11: #{transformer_model_forward.1} parent=5 // pred_region
        %s213 = ssub.s32 %s16, 1
        // Predicated region
        $region13: #{transformer_model_forward.1} parent=11 // pred_check
          %p214 = pneg %p89
        $region14: #{transformer_model_forward.1} parent=11 // pred_check_branch
          %216 = sbr.rel (%p214) target = $region16
        $region15: #{transformer_model_forward.1} parent=11 // pred_region
          _
        $region16: #{transformer_model_forward.1} parent=11 // pred_fallthru
          _
        // Predicated region
        $region17: #{transformer_model_forward.1} parent=11 // pred_check
          %p217 = pneg %p110
        $region18: #{transformer_model_forward.1} parent=11 // pred_check_branch
          %219 = sbr.rel (%p217) target = $region20
        $region19: #{transformer_model_forward.1} parent=11 // pred_region
          _
        $region20: #{transformer_model_forward.1} parent=11 // pred_fallthru
          _
        // Predicated region
        $region21: #{transformer_model_forward.1} parent=11 // pred_check
          %p220 = pneg %p131
        $region22: #{transformer_model_forward.1} parent=11 // pred_check_branch
          %222 = sbr.rel (%p220) target = $region24
        $region23: #{transformer_model_forward.1} parent=11 // pred_region
          _
        $region24: #{transformer_model_forward.1} parent=11 // pred_fallthru
          _
        // Predicated region
        $region25: #{transformer_model_forward.1} parent=11 // pred_check
          %p223 = pneg %p152
        $region26: #{transformer_model_forward.1} parent=11 // pred_check_branch
          %225 = sbr.rel (%p223) target = $region28
        $region27: #{transformer_model_forward.1} parent=11 // pred_region
          _
        $region28: #{transformer_model_forward.1} parent=11 // pred_fallthru
          _
        // Predicated region
        $region29: #{transformer_model_forward.1} parent=11 // pred_check
          %p226 = pneg %p173
        $region30: #{transformer_model_forward.1} parent=11 // pred_check_branch
          %228 = sbr.rel (%p226) target = $region32
        $region31: #{transformer_model_forward.1} parent=11 // pred_region
          _
        $region32: #{transformer_model_forward.1} parent=11 // pred_fallthru
          _
      $region12: #{transformer_model_forward.1} parent=5 // pred_fallthru
        _
      %p229 = scmp.lt.s32.totalorder %s16, 2
      // Predicated region
      $region33: #{transformer_model_forward.1} parent=5 // pred_check
        %p230 = pneg %p229
      $region34: #{transformer_model_forward.1} parent=5 // pred_check_branch
        %232 = sbr.rel (%p230) target = $region36
      $region35: #{transformer_model_forward.1} parent=5 // pred_region
        // Predicated region
        $region37: #{transformer_model_forward.1} parent=35 // pred_check
          %p233 = pneg %p36
        $region38: #{transformer_model_forward.1} parent=35 // pred_check_branch
          %235 = sbr.rel (%p233) target = $region40
        $region39: #{transformer_model_forward.1} parent=35 // pred_region
          %p236 = scmp.lt.s32.totalorder %s16, 1
          %s237 = scalar_select %p236, %s16, 1
          %s238 = smul.addr %s237, 8
          %s239 = scalar_lea.vmem %s0, %s238
        $region40: #{transformer_model_forward.1} parent=35 // pred_fallthru
          _
        // Predicated region
        $region41: #{transformer_model_forward.1} parent=35 // pred_check
          %p240 = pneg %p62
        $region42: #{transformer_model_forward.1} parent=35 // pred_check_branch
          %242 = sbr.rel (%p240) target = $region44
        $region43: #{transformer_model_forward.1} parent=35 // pred_region
          %p243 = scmp.lt.s32.totalorder %s16, 1
          %s244 = scalar_select %p243, %s16, 1
          %s245 = scalar_lea.vmem %s1, %s244
        $region44: #{transformer_model_forward.1} parent=35 // pred_fallthru
          _
      $region36: #{transformer_model_forward.1} parent=5 // pred_fallthru
        _
      %p246 = scmp.le.s32.totalorder 1, %s16
      %p247 = scmp.lt.s32.totalorder %s16, 3
      %p248 = pnand %p246, %p247
      %p249 = pneg %p248
      // Predicated region
      $region45: #{transformer_model_forward.1} parent=5 // pred_check
        _
      $region46: #{transformer_model_forward.1} parent=5 // pred_check_branch
        %251 = sbr.rel (%p248) target = $region48
      $region47: #{transformer_model_forward.1} parent=5 // pred_region
        %s252 = ssub.s32 %s16, 1
        %p253 = scmp.lt.s32.totalorder %s21, 1
        %s254 = scalar_select %p253, %s21, 1
        %s255 = smul.addr %s254, 8
        %s256 = scalar_lea.vmem %s0, %s255
        %p257 = pneg %p42
        %p258 = pneg %p39
        %p259 = scmp.lt.s32.totalorder %s21, 1
        %s260 = scalar_select %p259, %s21, 1
        %s261 = scalar_lea.vmem %s1, %s260
        %p262 = pneg %p68
        %p263 = pneg %p65
        %p264 = pneg %p89
        %p265 = pneg %p86
        %p266 = pneg %p110
        %p267 = pneg %p107
        %p268 = pneg %p131
        %p269 = pneg %p128
        %p270 = pneg %p152
        %p271 = pneg %p149
        %p272 = pneg %p173
        %p273 = pneg %p170
        %p274 = pneg %p199
        %p275 = pneg %p196
        %s276 = sand.u32 %s186, 1
        %s277 = scalar_lea.sflag [#allocation3], %s276
        %s278 = sand.u32 %s186, 1
        %s279 = scalar_lea.vmem [#allocation2], %s278
        %p280 = scmp.lt.s32.totalorder %s21, 1
        %s281 = scalar_select %p280, %s21, 1
        %s282 = smul.addr %s281, 8
        %s283 = scalar_lea.vmem %s0, %s282
        %p284 = scmp.lt.s32.totalorder %s21, 1
        %s285 = scalar_select %p284, %s21, 1
        %s286 = scalar_lea.vmem %s1, %s285
        %v288 = vld [vmem:[%s6] sm:$0x3]
        %v289 = vld [vmem:[%s283] sm:$0xff]
        %vm290 = vcmask 261120
        %v291 = vsel %vm290, %v289, 0.0
        %292 = vadd.xlane.f32.xlu0 %v291
        %v293 = vpop.xlane.xlu0 %292
        %v294 = vrcp.pop 32.0
        %v295 = vmul.f32 %v293, %v294
        %v296 = vsub.f32 %v289, %v295
        %v297 = vmul.f32 %v296, %v296
        %v298 = vsel %vm290, %v297, 0.0
        %299 = vadd.xlane.f32.xlu0 %v298
        %v300 = vpop.xlane.xlu0 %299
        %v301 = vmul.f32 %v300, %v294
        %v302 = vadd.f32 %v301, 1e-12
        %v303 = vrsqrt.pop %v302
        %v304 = vmul.f32 %v296, %v303
        %v305 = vlaneseq
        %v306 = vshrl.u32 %v305, 7
        %v307 = vsub.s32 0, %v306
        %v308 = vrot.slane %v288, %v307
        %v309 = vmul.f32 %v304, %v308
        %311 = vrot.lane.b32.xlu0 %v308, 96
        %v312 = vpop.permute.xlu0 %311
        %v314 = vadd.f32 %v309, %v312
        %v315 = vld [vmem:[%s286] sm:$0x1]
        %v316 = vld [vmem:[%s2] sm:$0xf]
        %v317 = vld [vmem:[%s2 + $0x4] sm:$0xf]
        %v318 = vld [vmem:[%s2 + $0x8] sm:$0xf]
        %v319 = vld [vmem:[%s2 + $0xc] sm:$0xf]
        %v320 = vld [vmem:[%s3] sm:$0xf]
        %v321 = vld [vmem:[%s3 + $0x4] sm:$0xf]
        %v322 = vld [vmem:[%s3 + $0x8] sm:$0xf]
        %v323 = vld [vmem:[%s3 + $0xc] sm:$0xf]
        %v324 = vld [vmem:[%s3 + $0x10] sm:$0xf]
        %v325 = vld [vmem:[%s3 + $0x14] sm:$0xf]
        %v326 = vld [vmem:[%s3 + $0x18] sm:$0xf]
        %v327 = vld [vmem:[%s3 + $0x1c] sm:$0xf]
        %v328 = vld [vmem:[%s3 + $0x20] sm:$0xf]
        %v329 = vld [vmem:[%s3 + $0x24] sm:$0xf]
        %v330 = vld [vmem:[%s3 + $0x28] sm:$0xf]
        %v331 = vld [vmem:[%s3 + $0x2c] sm:$0xf]
        %v332 = vld [vmem:[%s4] sm:$0x7]
        %v333 = vpack.c.bf16 %v314, %v314
        %v334 = vlaneseq
        %v335 = vshrl.u32 %v334, 7
        %v336 = vsub.s32 0, %v335
        %v337 = vrot.slane %v332, %v336
        %v342 = vunpack.c.l.b16 %v316
        %v343 = vunpack.c.l.b16 %v317
        %v344 = vunpack.c.l.b16 %v318
        %v345 = vunpack.c.l.b16 %v319
        %v346 = vpack.c.b16 %v343, %v342
        %v347 = vpack.c.b16 %v345, %v344
        %v351 = vsel %vm290, %v333, 0
        %353 = vmatprep.subr.bf16.mxu0 0
        %354 = vmatpush1.bf16.msra.mxu0 %v346
        %355 = vmatprep.subr.bf16.mxu0 0
        %356 = vmatpush1.bf16.msra.mxu0 %v347
        %357 = vmatprep.subr.bf16.mxu0 0
        %358 = vmatpush1.bf16.msra.mxu0 0
        %359 = vmatprep.subr.bf16.mxu0 0
        %360 = vmatpush1.bf16.msra.mxu0 0
        %361 = vmatprep.subr.bf16.mxu0 0
        %362 = vmatpush1.bf16.msra.mxu0 0
        %363 = vmatprep.subr.bf16.mxu0 0
        %364 = vmatpush1.bf16.msra.mxu0 0
        %365 = vmatprep.subr.bf16.mxu0 0
        %366 = vmatpush1.bf16.msra.mxu0 0
        %367 = vmatprep.subr.bf16.mxu0 0
        %368 = vmatpush1.bf16.msra.mxu0 0
        %369 = vmatprep.subr.bf16.mxu0 0
        %370 = vmatpush1.bf16.msra.mxu0 0
        %371 = vmatprep.subr.bf16.mxu0 0
        %372 = vmatpush1.bf16.msra.mxu0 0
        %373 = vmatprep.subr.bf16.mxu0 0
        %374 = vmatpush1.bf16.msra.mxu0 0
        %375 = vmatprep.subr.bf16.mxu0 0
        %376 = vmatpush1.bf16.msra.mxu0 0
        %377 = vmatprep.subr.bf16.mxu0 0
        %378 = vmatpush1.bf16.msra.mxu0 0
        %379 = vmatprep.subr.bf16.mxu0 0
        %380 = vmatpush1.bf16.msra.mxu0 0
        %381 = vmatprep.subr.bf16.mxu0 0
        %382 = vmatpush1.bf16.msra.mxu0 0
        %383 = vmatprep.subr.bf16.mxu0 0
        %384 = vmatpush1.bf16.msra.mxu0 0
        %385 = vmatprep.mubr.bf16.mxu0 0
        %386 = vmatmul.mubr.bf16.gmra.mrb[0].mxu0 %v351
        %v387 = vpop.f32.mrb[0].mxu0
        %v388 = vadd.f32 %v337, %v387
        %v389 = vpop.f32.mrb[0].mxu0
        %v390 = vpop.f32.mrb[0].mxu0
        %v391 = vpop.f32.mrb[0].mxu0
        %392 = vdwg.mxu0
        %v393 = vmul.f32 %v388, 0.25
        %v394 = vpack.c.bf16 %v393, %v393
        %v395 = vpack.c.bf16 %v388, %v388
        %v397 = vlaneseq
        %v398 = vshrl.u32 %v397, 7
        %v399 = vsub.s32 0, %v398
        %v400 = vrot.slane %v315, %v399
        %403 = vrot.lane.b32.xlu0 %v395, 96
        %v404 = vpop.permute.xlu0 %403
        %vm405 = vcmask 130048
        %v407 = vsel %vm405, %v394, 0
        %v410 = vsel %vm405, %v404, 0
        %412 = vmatprep.subr.bf16.mxu0 0
        %413 = vmatpush1.bf16.xpose.msra.mxu0 %v410
        %414 = vmatprep.subr.bf16.mxu0 0
        %415 = vmatpush1.bf16.xpose.msra.mxu0 0
        %416 = vmatprep.subr.bf16.mxu0 0
        %417 = vmatpush1.bf16.xpose.msra.mxu0 0
        %418 = vmatprep.subr.bf16.mxu0 0
        %419 = vmatpush1.bf16.xpose.msra.mxu0 0
        %420 = vmatprep.subr.bf16.mxu0 0
        %421 = vmatpush1.bf16.xpose.msra.mxu0 0
        %422 = vmatprep.subr.bf16.mxu0 0
        %423 = vmatpush1.bf16.xpose.msra.mxu0 0
        %424 = vmatprep.subr.bf16.mxu0 0
        %425 = vmatpush1.bf16.xpose.msra.mxu0 0
        %426 = vmatprep.subr.bf16.mxu0 0
        %427 = vmatpush1.bf16.xpose.msra.mxu0 0
        %428 = vmatprep.subr.bf16.mxu0 0
        %429 = vmatpush1.bf16.xpose.msra.mxu0 0
        %430 = vmatprep.subr.bf16.mxu0 0
        %431 = vmatpush1.bf16.xpose.msra.mxu0 0
        %432 = vmatprep.subr.bf16.mxu0 0
        %433 = vmatpush1.bf16.xpose.msra.mxu0 0
        %434 = vmatprep.subr.bf16.mxu0 0
        %435 = vmatpush1.bf16.xpose.msra.mxu0 0
        %436 = vmatprep.subr.bf16.mxu0 0
        %437 = vmatpush1.bf16.xpose.msra.mxu0 0
        %438 = vmatprep.subr.bf16.mxu0 0
        %439 = vmatpush1.bf16.xpose.msra.mxu0 0
        %440 = vmatprep.subr.bf16.mxu0 0
        %441 = vmatpush1.bf16.xpose.msra.mxu0 0
        %442 = vmatprep.subr.bf16.mxu0 0
        %443 = vmatpush1.bf16.xpose.msra.mxu0 0
        %444 = vmatprep.mubr.bf16.mxu0 0
        %445 = vmatmul.mubr.bf16.gmra.mrb[0].mxu0 %v407
        %v446 = vpop.f32.mrb[0].mxu0
        %v447 = vadd.f32 %v400, %v446
        %v448 = vpop.f32.mrb[0].mxu0
        %v449 = vpop.f32.mrb[0].mxu0
        %v450 = vpop.f32.mrb[0].mxu0
        %451 = vdwg.mxu0
        %vm452 = vcmask 64512
        %v453 = vsel %vm452, %v447, -inf
        %454 = vmax.xlane.f32.xlu0 %v453
        %v455 = vpop.xlane.xlu0 %454
        %v456 = vsub.f32 %v447, %v455
        %v457 = vmul.f32 %v456, 1.442695
        %v458 = vpow.pop %v457
        %v459 = vsel %vm452, %v458, 0.0
        %460 = vadd.xlane.f32.xlu0 %v459
        %v461 = vpop.xlane.xlu0 %460
        %v462 = vrcp.pop %v461
        %v463 = vmul.f32 %v458, %v462
        %v464 = vpack.c.bf16 %v463, %v463
        %465 = vrot.lane.b32.xlu0 %v395, 64
        %v466 = vpop.permute.xlu0 %465
        %v468 = vsel %vm452, %v464, 0
        %vm470 = vcmask 1043456
        %v472 = vsel %vm470, %v466, 0
        %474 = vmatprep.subr.bf16.mxu0 0
        %475 = vmatpush1.bf16.msra.mxu0 %v472
        %476 = vmatprep.subr.bf16.mxu0 0
        %477 = vmatpush1.bf16.msra.mxu0 0
        %478 = vmatprep.subr.bf16.mxu0 0
        %479 = vmatpush1.bf16.msra.mxu0 0
        %480 = vmatprep.subr.bf16.mxu0 0
        %481 = vmatpush1.bf16.msra.mxu0 0
        %482 = vmatprep.subr.bf16.mxu0 0
        %483 = vmatpush1.bf16.msra.mxu0 0
        %484 = vmatprep.subr.bf16.mxu0 0
        %485 = vmatpush1.bf16.msra.mxu0 0
        %486 = vmatprep.subr.bf16.mxu0 0
        %487 = vmatpush1.bf16.msra.mxu0 0
        %488 = vmatprep.subr.bf16.mxu0 0
        %489 = vmatpush1.bf16.msra.mxu0 0
        %490 = vmatprep.subr.bf16.mxu0 0
        %491 = vmatpush1.bf16.msra.mxu0 0
        %492 = vmatprep.subr.bf16.mxu0 0
        %493 = vmatpush1.bf16.msra.mxu0 0
        %494 = vmatprep.subr.bf16.mxu0 0
        %495 = vmatpush1.bf16.msra.mxu0 0
        %496 = vmatprep.subr.bf16.mxu0 0
        %497 = vmatpush1.bf16.msra.mxu0 0
        %498 = vmatprep.subr.bf16.mxu0 0
        %499 = vmatpush1.bf16.msra.mxu0 0
        %500 = vmatprep.subr.bf16.mxu0 0
        %501 = vmatpush1.bf16.msra.mxu0 0
        %502 = vmatprep.subr.bf16.mxu0 0
        %503 = vmatpush1.bf16.msra.mxu0 0
        %504 = vmatprep.subr.bf16.mxu0 0
        %505 = vmatpush1.bf16.msra.mxu0 0
        %506 = vmatprep.mubr.bf16.mxu0 0
        %507 = vmatmul.mubr.bf16.gmra.mrb[0].mxu0 %v468
        %v508 = vpop.f32.mrb[0].mxu0
        %v509 = vadd.f32 0.0, %v508
        %v510 = vpop.f32.mrb[0].mxu0
        %v511 = vpop.f32.mrb[0].mxu0
        %v512 = vpop.f32.mrb[0].mxu0
        %513 = vdwg.mxu0
        %515 = vrot.lane.b32.xlu0 %v394, 112
        %v516 = vpop.permute.xlu0 %515
        %517 = vrot.lane.b32.xlu0 %v395, 80
        %v518 = vpop.permute.xlu0 %517
        %v520 = vsel %vm405, %v516, 0
        %v523 = vsel %vm405, %v518, 0
        %525 = vmatprep.subr.bf16.mxu0 0
        %526 = vmatpush1.bf16.xpose.msra.mxu0 %v523
        %527 = vmatprep.subr.bf16.mxu0 0
        %528 = vmatpush1.bf16.xpose.msra.mxu0 0
        %529 = vmatprep.subr.bf16.mxu0 0
        %530 = vmatpush1.bf16.xpose.msra.mxu0 0
        %531 = vmatprep.subr.bf16.mxu0 0
        %532 = vmatpush1.bf16.xpose.msra.mxu0 0
        %533 = vmatprep.subr.bf16.mxu0 0
        %534 = vmatpush1.bf16.xpose.msra.mxu0 0
        %535 = vmatprep.subr.bf16.mxu0 0
        %536 = vmatpush1.bf16.xpose.msra.mxu0 0
        %537 = vmatprep.subr.bf16.mxu0 0
        %538 = vmatpush1.bf16.xpose.msra.mxu0 0
        %539 = vmatprep.subr.bf16.mxu0 0
        %540 = vmatpush1.bf16.xpose.msra.mxu0 0
        %541 = vmatprep.subr.bf16.mxu0 0
        %542 = vmatpush1.bf16.xpose.msra.mxu0 0
        %543 = vmatprep.subr.bf16.mxu0 0
        %544 = vmatpush1.bf16.xpose.msra.mxu0 0
        %545 = vmatprep.subr.bf16.mxu0 0
        %546 = vmatpush1.bf16.xpose.msra.mxu0 0
        %547 = vmatprep.subr.bf16.mxu0 0
        %548 = vmatpush1.bf16.xpose.msra.mxu0 0
        %549 = vmatprep.subr.bf16.mxu0 0
        %550 = vmatpush1.bf16.xpose.msra.mxu0 0
        %551 = vmatprep.subr.bf16.mxu0 0
        %552 = vmatpush1.bf16.xpose.msra.mxu0 0
        %553 = vmatprep.subr.bf16.mxu0 0
        %554 = vmatpush1.bf16.xpose.msra.mxu0 0
        %555 = vmatprep.subr.bf16.mxu0 0
        %556 = vmatpush1.bf16.xpose.msra.mxu0 0
        %557 = vmatprep.mubr.bf16.mxu0 0
        %558 = vmatmul.mubr.bf16.gmra.mrb[0].mxu0 %v520
        %v559 = vpop.f32.mrb[0].mxu0
        %v560 = vadd.f32 %v400, %v559
        %v561 = vpop.f32.mrb[0].mxu0
        %v562 = vpop.f32.mrb[0].mxu0
        %v563 = vpop.f32.mrb[0].mxu0
        %564 = vdwg.mxu0
        %v565 = vsel %vm452, %v560, -inf
        %566 = vmax.xlane.f32.xlu0 %v565
        %v567 = vpop.xlane.xlu0 %566
        %v568 = vsub.f32 %v560, %v567
        %v569 = vmul.f32 %v568, 1.442695
        %v570 = vpow.pop %v569
        %v571 = vsel %vm452, %v570, 0.0
        %572 = vadd.xlane.f32.xlu0 %v571
        %v573 = vpop.xlane.xlu0 %572
        %v574 = vrcp.pop %v573
        %v575 = vmul.f32 %v570, %v574
        %v576 = vpack.c.bf16 %v575, %v575
        %577 = vrot.lane.b32.xlu0 %v395, 48
        %v578 = vpop.permute.xlu0 %577
        %v580 = vsel %vm452, %v576, 0
        %v583 = vsel %vm470, %v578, 0
        %585 = vmatprep.subr.bf16.mxu0 0
        %586 = vmatpush1.bf16.msra.mxu0 %v583
        %587 = vmatprep.subr.bf16.mxu0 0
        %588 = vmatpush1.bf16.msra.mxu0 0
        %589 = vmatprep.subr.bf16.mxu0 0
        %590 = vmatpush1.bf16.msra.mxu0 0
        %591 = vmatprep.subr.bf16.mxu0 0
        %592 = vmatpush1.bf16.msra.mxu0 0
        %593 = vmatprep.subr.bf16.mxu0 0
        %594 = vmatpush1.bf16.msra.mxu0 0
        %595 = vmatprep.subr.bf16.mxu0 0
        %596 = vmatpush1.bf16.msra.mxu0 0
        %597 = vmatprep.subr.bf16.mxu0 0
        %598 = vmatpush1.bf16.msra.mxu0 0
        %599 = vmatprep.subr.bf16.mxu0 0
        %600 = vmatpush1.bf16.msra.mxu0 0
        %601 = vmatprep.subr.bf16.mxu0 0
        %602 = vmatpush1.bf16.msra.mxu0 0
        %603 = vmatprep.subr.bf16.mxu0 0
        %604 = vmatpush1.bf16.msra.mxu0 0
        %605 = vmatprep.subr.bf16.mxu0 0
        %606 = vmatpush1.bf16.msra.mxu0 0
        %607 = vmatprep.subr.bf16.mxu0 0
        %608 = vmatpush1.bf16.msra.mxu0 0
        %609 = vmatprep.subr.bf16.mxu0 0
        %610 = vmatpush1.bf16.msra.mxu0 0
        %611 = vmatprep.subr.bf16.mxu0 0
        %612 = vmatpush1.bf16.msra.mxu0 0
        %613 = vmatprep.subr.bf16.mxu0 0
        %614 = vmatpush1.bf16.msra.mxu0 0
        %615 = vmatprep.subr.bf16.mxu0 0
        %616 = vmatpush1.bf16.msra.mxu0 0
        %617 = vmatprep.mubr.bf16.mxu0 0
        %618 = vmatmul.mubr.bf16.gmra.mrb[0].mxu0 %v580
        %v619 = vpop.f32.mrb[0].mxu0
        %v620 = vadd.f32 0.0, %v619
        %v621 = vpop.f32.mrb[0].mxu0
        %v622 = vpop.f32.mrb[0].mxu0
        %v623 = vpop.f32.mrb[0].mxu0
        %624 = vdwg.mxu0
        %626 = vrot.lane.b32.xlu0 %v620, 16
        %v627 = vpop.permute.xlu0 %626
        %v629 = vsel %vm405, %v509, %v627
        %v630 = vpack.c.bf16 %v629, %v629
        %631 = vrot.lane.b32.xlu0 %v346, 32
        %v632 = vpop.permute.xlu0 %631
        %633 = vrot.lane.b32.xlu0 %v347, 32
        %v634 = vpop.permute.xlu0 %633
        %638 = vrot.lane.b32.xlu0 %v337, 32
        %v639 = vpop.permute.xlu0 %638
        %v642 = vsel %vm290, %v630, 0
        %644 = vmatprep.subr.bf16.mxu0 0
        %645 = vmatpush1.bf16.msra.mxu0 %v632
        %646 = vmatprep.subr.bf16.mxu0 0
        %647 = vmatpush1.bf16.msra.mxu0 %v634
        %648 = vmatprep.subr.bf16.mxu0 0
        %649 = vmatpush1.bf16.msra.mxu0 0
        %650 = vmatprep.subr.bf16.mxu0 0
        %651 = vmatpush1.bf16.msra.mxu0 0
        %652 = vmatprep.subr.bf16.mxu0 0
        %653 = vmatpush1.bf16.msra.mxu0 0
        %654 = vmatprep.subr.bf16.mxu0 0
        %655 = vmatpush1.bf16.msra.mxu0 0
        %656 = vmatprep.subr.bf16.mxu0 0
        %657 = vmatpush1.bf16.msra.mxu0 0
        %658 = vmatprep.subr.bf16.mxu0 0
        %659 = vmatpush1.bf16.msra.mxu0 0
        %660 = vmatprep.subr.bf16.mxu0 0
        %661 = vmatpush1.bf16.msra.mxu0 0
        %662 = vmatprep.subr.bf16.mxu0 0
        %663 = vmatpush1.bf16.msra.mxu0 0
        %664 = vmatprep.subr.bf16.mxu0 0
        %665 = vmatpush1.bf16.msra.mxu0 0
        %666 = vmatprep.subr.bf16.mxu0 0
        %667 = vmatpush1.bf16.msra.mxu0 0
        %668 = vmatprep.subr.bf16.mxu0 0
        %669 = vmatpush1.bf16.msra.mxu0 0
        %670 = vmatprep.subr.bf16.mxu0 0
        %671 = vmatpush1.bf16.msra.mxu0 0
        %672 = vmatprep.subr.bf16.mxu0 0
        %673 = vmatpush1.bf16.msra.mxu0 0
        %674 = vmatprep.subr.bf16.mxu0 0
        %675 = vmatpush1.bf16.msra.mxu0 0
        %676 = vmatprep.mubr.bf16.mxu0 0
        %677 = vmatmul.mubr.bf16.gmra.mrb[0].mxu0 %v642
        %v678 = vpop.f32.mrb[0].mxu0
        %v679 = vadd.f32 %v639, %v678
        %v680 = vpop.f32.mrb[0].mxu0
        %v681 = vpop.f32.mrb[0].mxu0
        %v682 = vpop.f32.mrb[0].mxu0
        %683 = vdwg.mxu0
        %v684 = vadd.f32 %v314, %v679
        %v685 = vsel %vm290, %v684, 0.0
        %686 = vadd.xlane.f32.xlu0 %v685
        %v687 = vpop.xlane.xlu0 %686
        %v688 = vmul.f32 %v687, %v294
        %v689 = vsub.f32 %v684, %v688
        %v690 = vmul.f32 %v689, %v689
        %v691 = vsel %vm290, %v690, 0.0
        %692 = vadd.xlane.f32.xlu0 %v691
        %v693 = vpop.xlane.xlu0 %692
        %v694 = vmul.f32 %v693, %v294
        %v695 = vadd.f32 %v694, 1e-12
        %v696 = vrsqrt.pop %v695
        %v697 = vmul.f32 %v689, %v696
        %v698 = vlaneseq
        %v699 = vshrl.u32 %v698, 7
        %v700 = vsub.s32 1, %v699
        %v701 = vrot.slane %v332, %v700
        %v702 = vmul.f32 %v697, %v701
        %704 = vrot.lane.b32.xlu0 %v701, 96
        %v705 = vpop.permute.xlu0 %704
        %v707 = vadd.f32 %v702, %v705
        %v708 = vpack.c.bf16 %v707, %v707
        %v709 = vlaneseq
        %v710 = vshrl.u32 %v709, 7
        %v711 = vsub.s32 2, %v710
        %v712 = vrot.slane %v332, %v711
        %v717 = vunpack.c.l.b16 %v320
        %v718 = vunpack.c.l.b16 %v321
        %v719 = vunpack.c.l.b16 %v322
        %v720 = vunpack.c.l.b16 %v323
        %v721 = vpack.c.b16 %v718, %v717
        %v722 = vpack.c.b16 %v720, %v719
        %v726 = vsel %vm290, %v708, 0
        %728 = vmatprep.subr.bf16.mxu0 0
        %729 = vmatpush1.bf16.msra.mxu0 %v721
        %730 = vmatprep.subr.bf16.mxu0 0
        %731 = vmatpush1.bf16.msra.mxu0 %v722
        %732 = vmatprep.subr.bf16.mxu0 0
        %733 = vmatpush1.bf16.msra.mxu0 0
        %734 = vmatprep.subr.bf16.mxu0 0
        %735 = vmatpush1.bf16.msra.mxu0 0
        %736 = vmatprep.subr.bf16.mxu0 0
        %737 = vmatpush1.bf16.msra.mxu0 0
        %738 = vmatprep.subr.bf16.mxu0 0
        %739 = vmatpush1.bf16.msra.mxu0 0
        %740 = vmatprep.subr.bf16.mxu0 0
        %741 = vmatpush1.bf16.msra.mxu0 0
        %742 = vmatprep.subr.bf16.mxu0 0
        %743 = vmatpush1.bf16.msra.mxu0 0
        %744 = vmatprep.subr.bf16.mxu0 0
        %745 = vmatpush1.bf16.msra.mxu0 0
        %746 = vmatprep.subr.bf16.mxu0 0
        %747 = vmatpush1.bf16.msra.mxu0 0
        %748 = vmatprep.subr.bf16.mxu0 0
        %749 = vmatpush1.bf16.msra.mxu0 0
        %750 = vmatprep.subr.bf16.mxu0 0
        %751 = vmatpush1.bf16.msra.mxu0 0
        %752 = vmatprep.subr.bf16.mxu0 0
        %753 = vmatpush1.bf16.msra.mxu0 0
        %754 = vmatprep.subr.bf16.mxu0 0
        %755 = vmatpush1.bf16.msra.mxu0 0
        %756 = vmatprep.subr.bf16.mxu0 0
        %757 = vmatpush1.bf16.msra.mxu0 0
        %758 = vmatprep.subr.bf16.mxu0 0
        %759 = vmatpush1.bf16.msra.mxu0 0
        %760 = vmatprep.mubr.bf16.mxu0 0
        %761 = vmatmul.mubr.bf16.gmra.mrb[0].mxu0 %v726
        %v762 = vpop.f32.mrb[0].mxu0
        %v763 = vadd.f32 %v712, %v762
        %v764 = vpop.f32.mrb[0].mxu0
        %v765 = vpop.f32.mrb[0].mxu0
        %v766 = vpop.f32.mrb[0].mxu0
        %767 = vdwg.mxu0
        %v768 = vmul.f32 %v763, 0.5
        %v769 = vmul.f32 %v763, 0.044715
        %v770 = vmul.f32 %v769, %v763
        %v771 = vmul.f32 %v770, %v763
        %v772 = vadd.f32 %v763, %v771
        %v773 = vmul.f32 %v772, 0.7978846
        %v774 = vtanh.pop %v773
        %v775 = vadd.f32 %v774, 1.0
        %v776 = vmul.f32 %v768, %v775
        %v777 = vpack.c.bf16 %v776, %v776
        %v786 = vunpack.c.l.b16 %v324
        %v787 = vunpack.c.l.b16 %v325
        %v788 = vunpack.c.l.b16 %v326
        %v789 = vunpack.c.l.b16 %v327
        %v790 = vunpack.c.l.b16 %v328
        %v791 = vunpack.c.l.b16 %v329
        %v792 = vunpack.c.l.b16 %v330
        %v793 = vunpack.c.l.b16 %v331
        %v794 = vpack.c.b16 %v787, %v786
        %v795 = vpack.c.b16 %v789, %v788
        %v796 = vpack.c.b16 %v791, %v790
        %v797 = vpack.c.b16 %v793, %v792
        %803 = vrot.lane.b32.xlu0 %v712, 64
        %v804 = vpop.permute.xlu0 %803
        %vm806 = vcmask 523264
        %v808 = vsel %vm806, %v777, 0
        %810 = vmatprep.subr.bf16.mxu0 0
        %811 = vmatpush1.bf16.msra.mxu0 %v794
        %812 = vmatprep.subr.bf16.mxu0 0
        %813 = vmatpush1.bf16.msra.mxu0 %v795
        %814 = vmatprep.subr.bf16.mxu0 0
        %815 = vmatpush1.bf16.msra.mxu0 %v796
        %816 = vmatprep.subr.bf16.mxu0 0
        %817 = vmatpush1.bf16.msra.mxu0 %v797
        %818 = vmatprep.subr.bf16.mxu0 0
        %819 = vmatpush1.bf16.msra.mxu0 0
        %820 = vmatprep.subr.bf16.mxu0 0
        %821 = vmatpush1.bf16.msra.mxu0 0
        %822 = vmatprep.subr.bf16.mxu0 0
        %823 = vmatpush1.bf16.msra.mxu0 0
        %824 = vmatprep.subr.bf16.mxu0 0
        %825 = vmatpush1.bf16.msra.mxu0 0
        %826 = vmatprep.subr.bf16.mxu0 0
        %827 = vmatpush1.bf16.msra.mxu0 0
        %828 = vmatprep.subr.bf16.mxu0 0
        %829 = vmatpush1.bf16.msra.mxu0 0
        %830 = vmatprep.subr.bf16.mxu0 0
        %831 = vmatpush1.bf16.msra.mxu0 0
        %832 = vmatprep.subr.bf16.mxu0 0
        %833 = vmatpush1.bf16.msra.mxu0 0
        %834 = vmatprep.subr.bf16.mxu0 0
        %835 = vmatpush1.bf16.msra.mxu0 0
        %836 = vmatprep.subr.bf16.mxu0 0
        %837 = vmatpush1.bf16.msra.mxu0 0
        %838 = vmatprep.subr.bf16.mxu0 0
        %839 = vmatpush1.bf16.msra.mxu0 0
        %840 = vmatprep.subr.bf16.mxu0 0
        %841 = vmatpush1.bf16.msra.mxu0 0
        %842 = vmatprep.mubr.bf16.mxu0 0
        %843 = vmatmul.mubr.bf16.gmra.mrb[0].mxu0 %v808
        %v844 = vpop.f32.mrb[0].mxu0
        %v845 = vadd.f32 %v804, %v844
        %v846 = vpop.f32.mrb[0].mxu0
        %v847 = vpop.f32.mrb[0].mxu0
        %v848 = vpop.f32.mrb[0].mxu0
        %849 = vdwg.mxu0
        %v850 = vadd.f32 %v707, %v845
        %v851 = vsel %vm290, %v850, 0.0
        %852 = vadd.xlane.f32.xlu0 %v851
        %v853 = vpop.xlane.xlu0 %852
        %v854 = vmul.f32 %v853, %v294
        %v855 = vsub.f32 %v850, %v854
        %v856 = vmul.f32 %v855, %v855
        %v857 = vsel %vm290, %v856, 0.0
        %858 = vadd.xlane.f32.xlu0 %v857
        %v859 = vpop.xlane.xlu0 %858
        %v860 = vmul.f32 %v859, %v294
        %v861 = vadd.f32 %v860, 1e-12
        %v862 = vrsqrt.pop %v861
        %v863 = vmul.f32 %v855, %v862
        %864 = vrot.lane.b32.xlu0 %v701, 64
        %v865 = vpop.permute.xlu0 %864
        %v867 = vmul.f32 %v863, %v865
        %868 = vrot.lane.b32.xlu0 %v701, 32
        %v869 = vpop.permute.xlu0 %868
        %v871 = vadd.f32 %v867, %v869
        %s872 = scalar_lea.vmem %s2, 16
        %v873 = vld [vmem:[%s872] sm:$0xf]
        %v874 = vld [vmem:[%s872 + $0x4] sm:$0xf]
        %v875 = vld [vmem:[%s872 + $0x8] sm:$0xf]
        %v876 = vld [vmem:[%s872 + $0xc] sm:$0xf]
        %s877 = scalar_lea.vmem %s3, 48
        %v878 = vld [vmem:[%s877] sm:$0xf]
        %v879 = vld [vmem:[%s877 + $0x4] sm:$0xf]
        %v880 = vld [vmem:[%s877 + $0x8] sm:$0xf]
        %v881 = vld [vmem:[%s877 + $0xc] sm:$0xf]
        %v882 = vld [vmem:[%s877 + $0x10] sm:$0xf]
        %v883 = vld [vmem:[%s877 + $0x14] sm:$0xf]
        %v884 = vld [vmem:[%s877 + $0x18] sm:$0xf]
        %v885 = vld [vmem:[%s877 + $0x1c] sm:$0xf]
        %v886 = vld [vmem:[%s877 + $0x20] sm:$0xf]
        %v887 = vld [vmem:[%s877 + $0x24] sm:$0xf]
        %v888 = vld [vmem:[%s877 + $0x28] sm:$0xf]
        %v889 = vld [vmem:[%s877 + $0x2c] sm:$0xf]
        %s890 = scalar_lea.vmem %s4, 4
        %v891 = vld [vmem:[%s890] sm:$0x7]
        %v892 = vpack.c.bf16 %v871, %v871
        %v893 = vlaneseq
        %v894 = vshrl.u32 %v893, 7
        %v895 = vsub.s32 0, %v894
        %v896 = vrot.slane %v891, %v895
        %v901 = vunpack.c.l.b16 %v873
        %v902 = vunpack.c.l.b16 %v874
        %v903 = vunpack.c.l.b16 %v875
        %v904 = vunpack.c.l.b16 %v876
        %v905 = vpack.c.b16 %v902, %v901
        %v906 = vpack.c.b16 %v904, %v903
        %v910 = vsel %vm290, %v892, 0
        %912 = vmatprep.subr.bf16.mxu0 0
        %913 = vmatpush1.bf16.msra.mxu0 %v905
        %914 = vmatprep.subr.bf16.mxu0 0
        %915 = vmatpush1.bf16.msra.mxu0 %v906
        %916 = vmatprep.subr.bf16.mxu0 0
        %917 = vmatpush1.bf16.msra.mxu0 0
        %918 = vmatprep.subr.bf16.mxu0 0
        %919 = vmatpush1.bf16.msra.mxu0 0
        %920 = vmatprep.subr.bf16.mxu0 0
        %921 = vmatpush1.bf16.msra.mxu0 0
        %922 = vmatprep.subr.bf16.mxu0 0
        %923 = vmatpush1.bf16.msra.mxu0 0
        %924 = vmatprep.subr.bf16.mxu0 0
        %925 = vmatpush1.bf16.msra.mxu0 0
        %926 = vmatprep.subr.bf16.mxu0 0
        %927 = vmatpush1.bf16.msra.mxu0 0
        %928 = vmatprep.subr.bf16.mxu0 0
        %929 = vmatpush1.bf16.msra.mxu0 0
        %930 = vmatprep.subr.bf16.mxu0 0
        %931 = vmatpush1.bf16.msra.mxu0 0
        %932 = vmatprep.subr.bf16.mxu0 0
        %933 = vmatpush1.bf16.msra.mxu0 0
        %934 = vmatprep.subr.bf16.mxu0 0
        %935 = vmatpush1.bf16.msra.mxu0 0
        %936 = vmatprep.subr.bf16.mxu0 0
        %937 = vmatpush1.bf16.msra.mxu0 0
        %938 = vmatprep.subr.bf16.mxu0 0
        %939 = vmatpush1.bf16.msra.mxu0 0
        %940 = vmatprep.subr.bf16.mxu0 0
        %941 = vmatpush1.bf16.msra.mxu0 0
        %942 = vmatprep.subr.bf16.mxu0 0
        %943 = vmatpush1.bf16.msra.mxu0 0
        %944 = vmatprep.mubr.bf16.mxu0 0
        %945 = vmatmul.mubr.bf16.gmra.mrb[0].mxu0 %v910
        %v946 = vpop.f32.mrb[0].mxu0
        %v947 = vadd.f32 %v896, %v946
        %v948 = vpop.f32.mrb[0].mxu0
        %v949 = vpop.f32.mrb[0].mxu0
        %v950 = vpop.f32.mrb[0].mxu0
        %951 = vdwg.mxu0
        %v952 = vmul.f32 %v947, 0.25
        %v953 = vpack.c.bf16 %v952, %v952
        %v954 = vpack.c.bf16 %v947, %v947
        %956 = vrot.lane.b32.xlu0 %v954, 96
        %v957 = vpop.permute.xlu0 %956
        %v959 = vsel %vm405, %v953, 0
        %v962 = vsel %vm405, %v957, 0
        %964 = vmatprep.subr.bf16.mxu0 0
        %965 = vmatpush1.bf16.xpose.msra.mxu0 %v962
        %966 = vmatprep.subr.bf16.mxu0 0
        %967 = vmatpush1.bf16.xpose.msra.mxu0 0
        %968 = vmatprep.subr.bf16.mxu0 0
        %969 = vmatpush1.bf16.xpose.msra.mxu0 0
        %970 = vmatprep.subr.bf16.mxu0 0
        %971 = vmatpush1.bf16.xpose.msra.mxu0 0
        %972 = vmatprep.subr.bf16.mxu0 0
        %973 = vmatpush1.bf16.xpose.msra.mxu0 0
        %974 = vmatprep.subr.bf16.mxu0 0
        %975 = vmatpush1.bf16.xpose.msra.mxu0 0
        %976 = vmatprep.subr.bf16.mxu0 0
        %977 = vmatpush1.bf16.xpose.msra.mxu0 0
        %978 = vmatprep.subr.bf16.mxu0 0
        %979 = vmatpush1.bf16.xpose.msra.mxu0 0
        %980 = vmatprep.subr.bf16.mxu0 0
        %981 = vmatpush1.bf16.xpose.msra.mxu0 0
        %982 = vmatprep.subr.bf16.mxu0 0
        %983 = vmatpush1.bf16.xpose.msra.mxu0 0
        %984 = vmatprep.subr.bf16.mxu0 0
        %985 = vmatpush1.bf16.xpose.msra.mxu0 0
        %986 = vmatprep.subr.bf16.mxu0 0
        %987 = vmatpush1.bf16.xpose.msra.mxu0 0
        %988 = vmatprep.subr.bf16.mxu0 0
        %989 = vmatpush1.bf16.xpose.msra.mxu0 0
        %990 = vmatprep.subr.bf16.mxu0 0
        %991 = vmatpush1.bf16.xpose.msra.mxu0 0
        %992 = vmatprep.subr.bf16.mxu0 0
        %993 = vmatpush1.bf16.xpose.msra.mxu0 0
        %994 = vmatprep.subr.bf16.mxu0 0
        %995 = vmatpush1.bf16.xpose.msra.mxu0 0
        %996 = vmatprep.mubr.bf16.mxu0 0
        %997 = vmatmul.mubr.bf16.gmra.mrb[0].mxu0 %v959
        %v998 = vpop.f32.mrb[0].mxu0
        %v999 = vadd.f32 %v400, %v998
        %v1000 = vpop.f32.mrb[0].mxu0
        %v1001 = vpop.f32.mrb[0].mxu0
        %v1002 = vpop.f32.mrb[0].mxu0
        %1003 = vdwg.mxu0
        %v1004 = vsel %vm452, %v999, -inf
        %1005 = vmax.xlane.f32.xlu0 %v1004
        %v1006 = vpop.xlane.xlu0 %1005
        %v1007 = vsub.f32 %v999, %v1006
        %v1008 = vmul.f32 %v1007, 1.442695
        %v1009 = vpow.pop %v1008
        %v1010 = vsel %vm452, %v1009, 0.0
        %1011 = vadd.xlane.f32.xlu0 %v1010
        %v1012 = vpop.xlane.xlu0 %1011
        %v1013 = vrcp.pop %v1012
        %v1014 = vmul.f32 %v1009, %v1013
        %v1015 = vpack.c.bf16 %v1014, %v1014
        %1016 = vrot.lane.b32.xlu0 %v954, 64
        %v1017 = vpop.permute.xlu0 %1016
        %v1019 = vsel %vm452, %v1015, 0
        %v1022 = vsel %vm470, %v1017, 0
        %1024 = vmatprep.subr.bf16.mxu0 0
        %1025 = vmatpush1.bf16.msra.mxu0 %v1022
        %1026 = vmatprep.subr.bf16.mxu0 0
        %1027 = vmatpush1.bf16.msra.mxu0 0
        %1028 = vmatprep.subr.bf16.mxu0 0
        %1029 = vmatpush1.bf16.msra.mxu0 0
        %1030 = vmatprep.subr.bf16.mxu0 0
        %1031 = vmatpush1.bf16.msra.mxu0 0
        %1032 = vmatprep.subr.bf16.mxu0 0
        %1033 = vmatpush1.bf16.msra.mxu0 0
        %1034 = vmatprep.subr.bf16.mxu0 0
        %1035 = vmatpush1.bf16.msra.mxu0 0
        %1036 = vmatprep.subr.bf16.mxu0 0
        %1037 = vmatpush1.bf16.msra.mxu0 0
        %1038 = vmatprep.subr.bf16.mxu0 0
        %1039 = vmatpush1.bf16.msra.mxu0 0
        %1040 = vmatprep.subr.bf16.mxu0 0
        %1041 = vmatpush1.bf16.msra.mxu0 0
        %1042 = vmatprep.subr.bf16.mxu0 0
        %1043 = vmatpush1.bf16.msra.mxu0 0
        %1044 = vmatprep.subr.bf16.mxu0 0
        %1045 = vmatpush1.bf16.msra.mxu0 0
        %1046 = vmatprep.subr.bf16.mxu0 0
        %1047 = vmatpush1.bf16.msra.mxu0 0
        %1048 = vmatprep.subr.bf16.mxu0 0
        %1049 = vmatpush1.bf16.msra.mxu0 0
        %1050 = vmatprep.subr.bf16.mxu0 0
        %1051 = vmatpush1.bf16.msra.mxu0 0
        %1052 = vmatprep.subr.bf16.mxu0 0
        %1053 = vmatpush1.bf16.msra.mxu0 0
        %1054 = vmatprep.subr.bf16.mxu0 0
        %1055 = vmatpush1.bf16.msra.mxu0 0
        %1056 = vmatprep.mubr.bf16.mxu0 0
        %1057 = vmatmul.mubr.bf16.gmra.mrb[0].mxu0 %v1019
        %v1058 = vpop.f32.mrb[0].mxu0
        %v1059 = vadd.f32 0.0, %v1058
        %v1060 = vpop.f32.mrb[0].mxu0
        %v1061 = vpop.f32.mrb[0].mxu0
        %v1062 = vpop.f32.mrb[0].mxu0
        %1063 = vdwg.mxu0
        %1065 = vrot.lane.b32.xlu0 %v953, 112
        %v1066 = vpop.permute.xlu0 %1065
        %1067 = vrot.lane.b32.xlu0 %v954, 80
        %v1068 = vpop.permute.xlu0 %1067
        %v1070 = vsel %vm405, %v1066, 0
        %v1073 = vsel %vm405, %v1068, 0
        %1075 = vmatprep.subr.bf16.mxu0 0
        %1076 = vmatpush1.bf16.xpose.msra.mxu0 %v1073
        %1077 = vmatprep.subr.bf16.mxu0 0
        %1078 = vmatpush1.bf16.xpose.msra.mxu0 0
        %1079 = vmatprep.subr.bf16.mxu0 0
        %1080 = vmatpush1.bf16.xpose.msra.mxu0 0
        %1081 = vmatprep.subr.bf16.mxu0 0
        %1082 = vmatpush1.bf16.xpose.msra.mxu0 0
        %1083 = vmatprep.subr.bf16.mxu0 0
        %1084 = vmatpush1.bf16.xpose.msra.mxu0 0
        %1085 = vmatprep.subr.bf16.mxu0 0
        %1086 = vmatpush1.bf16.xpose.msra.mxu0 0
        %1087 = vmatprep.subr.bf16.mxu0 0
        %1088 = vmatpush1.bf16.xpose.msra.mxu0 0
        %1089 = vmatprep.subr.bf16.mxu0 0
        %1090 = vmatpush1.bf16.xpose.msra.mxu0 0
        %1091 = vmatprep.subr.bf16.mxu0 0
        %1092 = vmatpush1.bf16.xpose.msra.mxu0 0
        %1093 = vmatprep.subr.bf16.mxu0 0
        %1094 = vmatpush1.bf16.xpose.msra.mxu0 0
        %1095 = vmatprep.subr.bf16.mxu0 0
        %1096 = vmatpush1.bf16.xpose.msra.mxu0 0
        %1097 = vmatprep.subr.bf16.mxu0 0
        %1098 = vmatpush1.bf16.xpose.msra.mxu0 0
        %1099 = vmatprep.subr.bf16.mxu0 0
        %1100 = vmatpush1.bf16.xpose.msra.mxu0 0
        %1101 = vmatprep.subr.bf16.mxu0 0
        %1102 = vmatpush1.bf16.xpose.msra.mxu0 0
        %1103 = vmatprep.subr.bf16.mxu0 0
        %1104 = vmatpush1.bf16.xpose.msra.mxu0 0
        %1105 = vmatprep.subr.bf16.mxu0 0
        %1106 = vmatpush1.bf16.xpose.msra.mxu0 0
        %1107 = vmatprep.mubr.bf16.mxu0 0
        %1108 = vmatmul.mubr.bf16.gmra.mrb[0].mxu0 %v1070
        %v1109 = vpop.f32.mrb[0].mxu0
        %v1110 = vadd.f32 %v400, %v1109
        %v1111 = vpop.f32.mrb[0].mxu0
        %v1112 = vpop.f32.mrb[0].mxu0
        %v1113 = vpop.f32.mrb[0].mxu0
        %1114 = vdwg.mxu0
        %v1115 = vsel %vm452, %v1110, -inf
        %1116 = vmax.xlane.f32.xlu0 %v1115
        %v1117 = vpop.xlane.xlu0 %1116
        %v1118 = vsub.f32 %v1110, %v1117
        %v1119 = vmul.f32 %v1118, 1.442695
        %v1120 = vpow.pop %v1119
        %v1121 = vsel %vm452, %v1120, 0.0
        %1122 = vadd.xlane.f32.xlu0 %v1121
        %v1123 = vpop.xlane.xlu0 %1122
        %v1124 = vrcp.pop %v1123
        %v1125 = vmul.f32 %v1120, %v1124
        %v1126 = vpack.c.bf16 %v1125, %v1125
        %1127 = vrot.lane.b32.xlu0 %v954, 48
        %v1128 = vpop.permute.xlu0 %1127
        %v1130 = vsel %vm452, %v1126, 0
        %v1133 = vsel %vm470, %v1128, 0
        %1135 = vmatprep.subr.bf16.mxu0 0
        %1136 = vmatpush1.bf16.msra.mxu0 %v1133
        %1137 = vmatprep.subr.bf16.mxu0 0
        %1138 = vmatpush1.bf16.msra.mxu0 0
        %1139 = vmatprep.subr.bf16.mxu0 0
        %1140 = vmatpush1.bf16.msra.mxu0 0
        %1141 = vmatprep.subr.bf16.mxu0 0
        %1142 = vmatpush1.bf16.msra.mxu0 0
        %1143 = vmatprep.subr.bf16.mxu0 0
        %1144 = vmatpush1.bf16.msra.mxu0 0
        %1145 = vmatprep.subr.bf16.mxu0 0
        %1146 = vmatpush1.bf16.msra.mxu0 0
        %1147 = vmatprep.subr.bf16.mxu0 0
        %1148 = vmatpush1.bf16.msra.mxu0 0
        %1149 = vmatprep.subr.bf16.mxu0 0
        %1150 = vmatpush1.bf16.msra.mxu0 0
        %1151 = vmatprep.subr.bf16.mxu0 0
        %1152 = vmatpush1.bf16.msra.mxu0 0
        %1153 = vmatprep.subr.bf16.mxu0 0
        %1154 = vmatpush1.bf16.msra.mxu0 0
        %1155 = vmatprep.subr.bf16.mxu0 0
        %1156 = vmatpush1.bf16.msra.mxu0 0
        %1157 = vmatprep.subr.bf16.mxu0 0
        %1158 = vmatpush1.bf16.msra.mxu0 0
        %1159 = vmatprep.subr.bf16.mxu0 0
        %1160 = vmatpush1.bf16.msra.mxu0 0
        %1161 = vmatprep.subr.bf16.mxu0 0
        %1162 = vmatpush1.bf16.msra.mxu0 0
        %1163 = vmatprep.subr.bf16.mxu0 0
        %1164 = vmatpush1.bf16.msra.mxu0 0
        %1165 = vmatprep.subr.bf16.mxu0 0
        %1166 = vmatpush1.bf16.msra.mxu0 0
        %1167 = vmatprep.mubr.bf16.mxu0 0
        %1168 = vmatmul.mubr.bf16.gmra.mrb[0].mxu0 %v1130
        %v1169 = vpop.f32.mrb[0].mxu0
        %v1170 = vadd.f32 0.0, %v1169
        %v1171 = vpop.f32.mrb[0].mxu0
        %v1172 = vpop.f32.mrb[0].mxu0
        %v1173 = vpop.f32.mrb[0].mxu0
        %1174 = vdwg.mxu0
        %1176 = vrot.lane.b32.xlu0 %v1170, 16
        %v1177 = vpop.permute.xlu0 %1176
        %v1179 = vsel %vm405, %v1059, %v1177
        %v1180 = vpack.c.bf16 %v1179, %v1179
        %1181 = vrot.lane.b32.xlu0 %v905, 32
        %v1182 = vpop.permute.xlu0 %1181
        %1183 = vrot.lane.b32.xlu0 %v906, 32
        %v1184 = vpop.permute.xlu0 %1183
        %1188 = vrot.lane.b32.xlu0 %v896, 32
        %v1189 = vpop.permute.xlu0 %1188
        %v1192 = vsel %vm290, %v1180, 0
        %1194 = vmatprep.subr.bf16.mxu0 0
        %1195 = vmatpush1.bf16.msra.mxu0 %v1182
        %1196 = vmatprep.subr.bf16.mxu0 0
        %1197 = vmatpush1.bf16.msra.mxu0 %v1184
        %1198 = vmatprep.subr.bf16.mxu0 0
        %1199 = vmatpush1.bf16.msra.mxu0 0
        %1200 = vmatprep.subr.bf16.mxu0 0
        %1201 = vmatpush1.bf16.msra.mxu0 0
        %1202 = vmatprep.subr.bf16.mxu0 0
        %1203 = vmatpush1.bf16.msra.mxu0 0
        %1204 = vmatprep.subr.bf16.mxu0 0
        %1205 = vmatpush1.bf16.msra.mxu0 0
        %1206 = vmatprep.subr.bf16.mxu0 0
        %1207 = vmatpush1.bf16.msra.mxu0 0
        %1208 = vmatprep.subr.bf16.mxu0 0
        %1209 = vmatpush1.bf16.msra.mxu0 0
        %1210 = vmatprep.subr.bf16.mxu0 0
        %1211 = vmatpush1.bf16.msra.mxu0 0
        %1212 = vmatprep.subr.bf16.mxu0 0
        %1213 = vmatpush1.bf16.msra.mxu0 0
        %1214 = vmatprep.subr.bf16.mxu0 0
        %1215 = vmatpush1.bf16.msra.mxu0 0
        %1216 = vmatprep.subr.bf16.mxu0 0
        %1217 = vmatpush1.bf16.msra.mxu0 0
        %1218 = vmatprep.subr.bf16.mxu0 0
        %1219 = vmatpush1.bf16.msra.mxu0 0
        %1220 = vmatprep.subr.bf16.mxu0 0
        %1221 = vmatpush1.bf16.msra.mxu0 0
        %1222 = vmatprep.subr.bf16.mxu0 0
        %1223 = vmatpush1.bf16.msra.mxu0 0
        %1224 = vmatprep.subr.bf16.mxu0 0
        %1225 = vmatpush1.bf16.msra.mxu0 0
        %1226 = vmatprep.mubr.bf16.mxu0 0
        %1227 = vmatmul.mubr.bf16.gmra.mrb[0].mxu0 %v1192
        %v1228 = vpop.f32.mrb[0].mxu0
        %v1229 = vadd.f32 %v1189, %v1228
        %v1230 = vpop.f32.mrb[0].mxu0
        %v1231 = vpop.f32.mrb[0].mxu0
        %v1232 = vpop.f32.mrb[0].mxu0
        %1233 = vdwg.mxu0
        %v1234 = vadd.f32 %v871, %v1229
        %v1235 = vsel %vm290, %v1234, 0.0
        %1236 = vadd.xlane.f32.xlu0 %v1235
        %v1237 = vpop.xlane.xlu0 %1236
        %v1238 = vmul.f32 %v1237, %v294
        %v1239 = vsub.f32 %v1234, %v1238
        %v1240 = vmul.f32 %v1239, %v1239
        %v1241 = vsel %vm290, %v1240, 0.0
        %1242 = vadd.xlane.f32.xlu0 %v1241
        %v1243 = vpop.xlane.xlu0 %1242
        %v1244 = vmul.f32 %v1243, %v294
        %v1245 = vadd.f32 %v1244, 1e-12
        %v1246 = vrsqrt.pop %v1245
        %v1247 = vmul.f32 %v1239, %v1246
        %v1248 = vlaneseq
        %v1249 = vshrl.u32 %v1248, 7
        %v1250 = vsub.s32 1, %v1249
        %v1251 = vrot.slane %v891, %v1250
        %v1252 = vmul.f32 %v1247, %v1251
        %1254 = vrot.lane.b32.xlu0 %v1251, 96
        %v1255 = vpop.permute.xlu0 %1254
        %v1257 = vadd.f32 %v1252, %v1255
        %v1258 = vpack.c.bf16 %v1257, %v1257
        %v1259 = vlaneseq
        %v1260 = vshrl.u32 %v1259, 7
        %v1261 = vsub.s32 2, %v1260
        %v1262 = vrot.slane %v891, %v1261
        %v1267 = vunpack.c.l.b16 %v878
        %v1268 = vunpack.c.l.b16 %v879
        %v1269 = vunpack.c.l.b16 %v880
        %v1270 = vunpack.c.l.b16 %v881
        %v1271 = vpack.c.b16 %v1268, %v1267
        %v1272 = vpack.c.b16 %v1270, %v1269
        %v1276 = vsel %vm290, %v1258, 0
        %1278 = vmatprep.subr.bf16.mxu0 0
        %1279 = vmatpush1.bf16.msra.mxu0 %v1271
        %1280 = vmatprep.subr.bf16.mxu0 0
        %1281 = vmatpush1.bf16.msra.mxu0 %v1272
        %1282 = vmatprep.subr.bf16.mxu0 0
        %1283 = vmatpush1.bf16.msra.mxu0 0
        %1284 = vmatprep.subr.bf16.mxu0 0
        %1285 = vmatpush1.bf16.msra.mxu0 0
        %1286 = vmatprep.subr.bf16.mxu0 0
        %1287 = vmatpush1.bf16.msra.mxu0 0
        %1288 = vmatprep.subr.bf16.mxu0 0
        %1289 = vmatpush1.bf16.msra.mxu0 0
        %1290 = vmatprep.subr.bf16.mxu0 0
        %1291 = vmatpush1.bf16.msra.mxu0 0
        %1292 = vmatprep.subr.bf16.mxu0 0
        %1293 = vmatpush1.bf16.msra.mxu0 0
        %1294 = vmatprep.subr.bf16.mxu0 0
        %1295 = vmatpush1.bf16.msra.mxu0 0
        %1296 = vmatprep.subr.bf16.mxu0 0
        %1297 = vmatpush1.bf16.msra.mxu0 0
        %1298 = vmatprep.subr.bf16.mxu0 0
        %1299 = vmatpush1.bf16.msra.mxu0 0
        %1300 = vmatprep.subr.bf16.mxu0 0
        %1301 = vmatpush1.bf16.msra.mxu0 0
        %1302 = vmatprep.subr.bf16.mxu0 0
        %1303 = vmatpush1.bf16.msra.mxu0 0
        %1304 = vmatprep.subr.bf16.mxu0 0
        %1305 = vmatpush1.bf16.msra.mxu0 0
        %1306 = vmatprep.subr.bf16.mxu0 0
        %1307 = vmatpush1.bf16.msra.mxu0 0
        %1308 = vmatprep.subr.bf16.mxu0 0
        %1309 = vmatpush1.bf16.msra.mxu0 0
        %1310 = vmatprep.mubr.bf16.mxu0 0
        %1311 = vmatmul.mubr.bf16.gmra.mrb[0].mxu0 %v1276
        %v1312 = vpop.f32.mrb[0].mxu0
        %v1313 = vadd.f32 %v1262, %v1312
        %v1314 = vpop.f32.mrb[0].mxu0
        %v1315 = vpop.f32.mrb[0].mxu0
        %v1316 = vpop.f32.mrb[0].mxu0
        %1317 = vdwg.mxu0
        %v1318 = vmul.f32 %v1313, 0.5
        %v1319 = vmul.f32 %v1313, 0.044715
        %v1320 = vmul.f32 %v1319, %v1313
        %v1321 = vmul.f32 %v1320, %v1313
        %v1322 = vadd.f32 %v1313, %v1321
        %v1323 = vmul.f32 %v1322, 0.7978846
        %v1324 = vtanh.pop %v1323
        %v1325 = vadd.f32 %v1324, 1.0
        %v1326 = vmul.f32 %v1318, %v1325
        %v1327 = vpack.c.bf16 %v1326, %v1326
        %v1336 = vunpack.c.l.b16 %v882
        %v1337 = vunpack.c.l.b16 %v883
        %v1338 = vunpack.c.l.b16 %v884
        %v1339 = vunpack.c.l.b16 %v885
        %v1340 = vunpack.c.l.b16 %v886
        %v1341 = vunpack.c.l.b16 %v887
        %v1342 = vunpack.c.l.b16 %v888
        %v1343 = vunpack.c.l.b16 %v889
        %v1344 = vpack.c.b16 %v1337, %v1336
        %v1345 = vpack.c.b16 %v1339, %v1338
        %v1346 = vpack.c.b16 %v1341, %v1340
        %v1347 = vpack.c.b16 %v1343, %v1342
        %1353 = vrot.lane.b32.xlu0 %v1262, 64
        %v1354 = vpop.permute.xlu0 %1353
        %v1357 = vsel %vm806, %v1327, 0
        %1359 = vmatprep.subr.bf16.mxu0 0
        %1360 = vmatpush1.bf16.msra.mxu0 %v1344
        %1361 = vmatprep.subr.bf16.mxu0 0
        %1362 = vmatpush1.bf16.msra.mxu0 %v1345
        %1363 = vmatprep.subr.bf16.mxu0 0
        %1364 = vmatpush1.bf16.msra.mxu0 %v1346
        %1365 = vmatprep.subr.bf16.mxu0 0
        %1366 = vmatpush1.bf16.msra.mxu0 %v1347
        %1367 = vmatprep.subr.bf16.mxu0 0
        %1368 = vmatpush1.bf16.msra.mxu0 0
        %1369 = vmatprep.subr.bf16.mxu0 0
        %1370 = vmatpush1.bf16.msra.mxu0 0
        %1371 = vmatprep.subr.bf16.mxu0 0
        %1372 = vmatpush1.bf16.msra.mxu0 0
        %1373 = vmatprep.subr.bf16.mxu0 0
        %1374 = vmatpush1.bf16.msra.mxu0 0
        %1375 = vmatprep.subr.bf16.mxu0 0
        %1376 = vmatpush1.bf16.msra.mxu0 0
        %1377 = vmatprep.subr.bf16.mxu0 0
        %1378 = vmatpush1.bf16.msra.mxu0 0
        %1379 = vmatprep.subr.bf16.mxu0 0
        %1380 = vmatpush1.bf16.msra.mxu0 0
        %1381 = vmatprep.subr.bf16.mxu0 0
        %1382 = vmatpush1.bf16.msra.mxu0 0
        %1383 = vmatprep.subr.bf16.mxu0 0
        %1384 = vmatpush1.bf16.msra.mxu0 0
        %1385 = vmatprep.subr.bf16.mxu0 0
        %1386 = vmatpush1.bf16.msra.mxu0 0
        %1387 = vmatprep.subr.bf16.mxu0 0
        %1388 = vmatpush1.bf16.msra.mxu0 0
        %1389 = vmatprep.subr.bf16.mxu0 0
        %1390 = vmatpush1.bf16.msra.mxu0 0
        %1391 = vmatprep.mubr.bf16.mxu0 0
        %1392 = vmatmul.mubr.bf16.gmra.mrb[0].mxu0 %v1357
        %v1393 = vpop.f32.mrb[0].mxu0
        %v1394 = vadd.f32 %v1354, %v1393
        %v1395 = vpop.f32.mrb[0].mxu0
        %v1396 = vpop.f32.mrb[0].mxu0
        %v1397 = vpop.f32.mrb[0].mxu0
        %1398 = vdwg.mxu0
        %v1399 = vadd.f32 %v1257, %v1394
        %v1400 = vsel %vm290, %v1399, 0.0
        %1401 = vadd.xlane.f32.xlu0 %v1400
        %v1402 = vpop.xlane.xlu0 %1401
        %v1403 = vmul.f32 %v1402, %v294
        %v1404 = vsub.f32 %v1399, %v1403
        %v1405 = vmul.f32 %v1404, %v1404
        %v1406 = vsel %vm290, %v1405, 0.0
        %1407 = vadd.xlane.f32.xlu0 %v1406
        %v1408 = vpop.xlane.xlu0 %1407
        %v1409 = vmul.f32 %v1408, %v294
        %v1410 = vadd.f32 %v1409, 1e-12
        %v1411 = vrsqrt.pop %v1410
        %v1412 = vmul.f32 %v1404, %v1411
        %1413 = vrot.lane.b32.xlu0 %v1251, 64
        %v1414 = vpop.permute.xlu0 %1413
        %v1416 = vmul.f32 %v1412, %v1414
        %1417 = vrot.lane.b32.xlu0 %v1251, 32
        %v1418 = vpop.permute.xlu0 %1417
        %v1420 = vadd.f32 %v1416, %v1418
        %v1421 = vpack.c.bf16 %v1420, %v1420
        %v1422 = vld [vmem:[%s5] sm:$0xf]
        %v1423 = vld [vmem:[%s5 + $0x4] sm:$0xf]
        %v1424 = vld [vmem:[%s5 + $0x8] sm:$0xf]
        %v1425 = vld [vmem:[%s5 + $0xc] sm:$0xf]
        %v1430 = vunpack.c.l.b16 %v1422
        %v1431 = vunpack.c.l.b16 %v1423
        %v1432 = vunpack.c.l.b16 %v1424
        %v1433 = vunpack.c.l.b16 %v1425
        %v1434 = vpack.c.b16 %v1431, %v1430
        %v1435 = vpack.c.b16 %v1433, %v1432
        %v1439 = vrot.slane %v288, 1
        %v1442 = vsel %vm290, %v1421, 0
        %1444 = vmatprep.subr.bf16.mxu0 0
        %1445 = vmatpush1.bf16.msra.mxu0 %v1434
        %1446 = vmatprep.subr.bf16.mxu0 0
        %1447 = vmatpush1.bf16.msra.mxu0 %v1435
        %1448 = vmatprep.subr.bf16.mxu0 0
        %1449 = vmatpush1.bf16.msra.mxu0 0
        %1450 = vmatprep.subr.bf16.mxu0 0
        %1451 = vmatpush1.bf16.msra.mxu0 0
        %1452 = vmatprep.subr.bf16.mxu0 0
        %1453 = vmatpush1.bf16.msra.mxu0 0
        %1454 = vmatprep.subr.bf16.mxu0 0
        %1455 = vmatpush1.bf16.msra.mxu0 0
        %1456 = vmatprep.subr.bf16.mxu0 0
        %1457 = vmatpush1.bf16.msra.mxu0 0
        %1458 = vmatprep.subr.bf16.mxu0 0
        %1459 = vmatpush1.bf16.msra.mxu0 0
        %1460 = vmatprep.subr.bf16.mxu0 0
        %1461 = vmatpush1.bf16.msra.mxu0 0
        %1462 = vmatprep.subr.bf16.mxu0 0
        %1463 = vmatpush1.bf16.msra.mxu0 0
        %1464 = vmatprep.subr.bf16.mxu0 0
        %1465 = vmatpush1.bf16.msra.mxu0 0
        %1466 = vmatprep.subr.bf16.mxu0 0
        %1467 = vmatpush1.bf16.msra.mxu0 0
        %1468 = vmatprep.subr.bf16.mxu0 0
        %1469 = vmatpush1.bf16.msra.mxu0 0
        %1470 = vmatprep.subr.bf16.mxu0 0
        %1471 = vmatpush1.bf16.msra.mxu0 0
        %1472 = vmatprep.subr.bf16.mxu0 0
        %1473 = vmatpush1.bf16.msra.mxu0 0
        %1474 = vmatprep.subr.bf16.mxu0 0
        %1475 = vmatpush1.bf16.msra.mxu0 0
        %1476 = vmatprep.mubr.bf16.mxu0 0
        %1477 = vmatmul.mubr.bf16.gmra.mrb[0].mxu0 %v1442
        %v1478 = vpop.f32.mrb[0].mxu0
        %v1479 = vadd.f32 %v1439, %v1478
        %v1480 = vpop.f32.mrb[0].mxu0
        %v1481 = vpop.f32.mrb[0].mxu0
        %v1482 = vpop.f32.mrb[0].mxu0
        %1483 = vdwg.mxu0
        %1484 = vst [vmem:[%s279] sm:$0x1] %v1479
        %s1485 = sand.u32 %s186, 1
        %s1486 = scalar_lea.sflag [#allocation3], %s1485
        %s1487 = sand.u32 %s186, 1
        %s1488 = scalar_lea.vmem [#allocation2], %s1487
        // Predicated region
        $region49: #{transformer_model_forward.1} parent=47 // pred_check
          %p1489 = pneg %p196
        $region50: #{transformer_model_forward.1} parent=47 // pred_check_branch
          %1491 = sbr.rel (%p1489) target = $region52
        $region51: #{transformer_model_forward.1} parent=47 // pred_region
          %s1493 = ssub.s32 16, 16
          %1494 = vsyncadd %s1486, %s1493
          %s1495 = smul.addr %s21, 16
          %s1496 = scalar_lea.hbm %s7, %s1495
          %s1498 = sshll.u32 %s1488, 4
          %s1499 = int_to_ptr.vmem [resolvable:$true] %s1498
          %1501 = dma.vmem_to_hbm [thread:$0]  %s1499, 16, %s1496, %s1486
        $region52: #{transformer_model_forward.1} parent=47 // pred_fallthru
          _
      $region48: #{transformer_model_forward.1} parent=5 // pred_fallthru
        _
      %p1502 = scmp.le.s32.totalorder 2, %s16
      // Predicated region
      $region53: #{transformer_model_forward.1} parent=5 // pred_check
        %p1503 = pneg %p1502
      $region54: #{transformer_model_forward.1} parent=5 // pred_check_branch
        %1505 = sbr.rel (%p1503) target = $region56
      $region55: #{transformer_model_forward.1} parent=5 // pred_region
        %s1506 = ssub.s32 %s16, 2
        // Predicated region
        $region57: #{transformer_model_forward.1} parent=55 // pred_check
          %p1507 = pneg %p202
        $region58: #{transformer_model_forward.1} parent=55 // pred_check_branch
          %1509 = sbr.rel (%p1507) target = $region60
        $region59: #{transformer_model_forward.1} parent=55 // pred_region
          %s1510 = sand.u32 %s187, 1
          %s1511 = scalar_lea.sflag [#allocation3], %s1510
          %s1512 = sand.u32 %s187, 1
          %s1513 = scalar_lea.vmem [#allocation2], %s1512
          %1514 = dma.done %s1511, 16
        $region60: #{transformer_model_forward.1} parent=55 // pred_fallthru
          _
      $region56: #{transformer_model_forward.1} parent=5 // pred_fallthru
        _
    $region6: #{transformer_model_forward.1} parent=1 // loop_footer
      %s20 = sadd.s32 1, %s16
    $region7: #{transformer_model_forward.1} parent=1 // loop_footer_branch
      %15 = sbr.rel target = $region3
    $region8: #{transformer_model_forward.1} parent=1 // loop_exit
      _
    %1515 = vsyncpa [#allocation3], 1
    %s1516 = scalar_lea.sflag [#allocation3], 1
    %1517 = vsyncpa %s1516, 1

</llo_original>
